<compile_context>
chip_gen: v7x
topology: tpu7x:2x2x1
jax: 0.10.0
libtpu: 0.0.40
codegen_flags: <defaults>
</compile_context>

<pallas_src>
import math
import numpy as np
import jax
import jax.numpy as jnp
from jax.experimental import pallas as pl
from jax.experimental.pallas import tpu as pltpu

K = 3            # kernel_size = (3, 3, 3), padding = (1, 1, 1), stride = (1, 1, 1)
NEG_SLOPE = 0.2  # LeakyReLU negative_slope


def _resblock_stack_kernel(x_ref, w1_ref, b1_ref, w2_ref, b2_ref, out_ref, pad_ref):
    """One ResBlock_2 layer per grid step; the activation is carried in out_ref.

    x_ref  : (N, D, P)      input activations, P = H*W*C (lane-dense), fetched once
    w1_ref : (1, 3P, P)     layer-l conv1 banded weights, bf16 (depth taps stacked on K)
    b1_ref : (1, 1, P)      layer-l conv1 bias tiled over (h, w)
    w2_ref : (1, 3P, P)     layer-l conv2 banded weights, bf16
    b2_ref : (1, 1, P)
    out_ref: (N, D, P)      resident carry / final output
    pad_ref: (N, D+2, P)    VMEM scratch: depth-zero-padded activation
    """
    Nb, D, P = out_ref.shape
    layer = pl.program_id(0)

    @pl.when(layer == 0)
    def _():
        out_ref[...] = x_ref[...]                       # bring the input into the carry
        zero = jnp.zeros((Nb, 1, P), jnp.float32)       # depth halo rows, written once
        pad_ref[:, 0:1, :] = zero
        pad_ref[:, D + 1:D + 2, :] = zero

    v = out_ref[...]                                    # carried activation (N, D, P)

    def conv(act, w_ref, b_ref):
        # depth-pad the activation (halo rows are already zero), then build the
        # (N*D, 3P) im2col over the 3 depth taps with a lane-aligned concat.
        pad_ref[:, 1:D + 1, :] = act
        col = jnp.concatenate(
            [pad_ref[:, 0:D, :].reshape(Nb * D, P),      # tap kd=0 (input depth d-1)
             pad_ref[:, 1:D + 1, :].reshape(Nb * D, P),  # tap kd=1 (input depth d)
             pad_ref[:, 2:D + 2, :].reshape(Nb * D, P)], # tap kd=2 (input depth d+1)
            axis=1)
        w = w_ref[0].astype(jnp.float32)                 # bf16 -> f32 (f32 accumulation)
        return jnp.dot(col, w, preferred_element_type=jnp.float32) + b_ref[0]

    h = conv(v, w1_ref, b1_ref)                          # conv1
    h = jnp.where(h >= 0, h, NEG_SLOPE * h)              # LeakyReLU(0.2)
    h = conv(h.reshape(Nb, D, P), w2_ref, b2_ref)        # conv2
    out_ref[...] = (v + h.reshape(Nb, D, P)).astype(out_ref.dtype)   # residual add


def _band_weights(w_oikkk, H, W):
    """Fold the in-plane 3x3 taps (and H/W zero-padding) of a 3x3x3 conv into banded
    matmul weights.

    w_oikkk: (Cout, Cin, 3, 3, 3) (PyTorch Conv3d layout)
    returns: (3, H*W*Cin, H*W*Cout); row index = (h_in, w_in, ci),
             col index = (h_out, w_out, co);
             entry = w[co,ci,kd,h_in-h_out+1,w_in-w_out+1] when in range, else 0.
    """
    Cout, Cin, KD, KH, KW = w_oikkk.shape
    wk = jnp.transpose(w_oikkk, (2, 3, 4, 1, 0))          # (KD, KH, KW, Cin, Cout)
    r = jnp.arange(H)
    c = jnp.arange(W)
    kh = r[:, None] - r[None, :] + KH // 2                # (H_in, H_out)
    kw = c[:, None] - c[None, :] + KW // 2                # (W_in, W_out)
    valid = (((kh >= 0) & (kh < KH))[:, :, None, None]
             & ((kw >= 0) & (kw < KW))[None, None, :, :])  # (H,H,W,W)
    kh_c = jnp.clip(kh, 0, KH - 1)
    kw_c = jnp.clip(kw, 0, KW - 1)
    # vals: (KD, H_in, H_out, W_in, W_out, Cin, Cout)
    vals = wk[:, kh_c[:, :, None, None], kw_c[None, None, :, :], :, :]
    vals = vals * valid[None, :, :, :, :, None, None].astype(wk.dtype)
    # -> (KD, H_in, W_in, Cin, H_out, W_out, Cout)
    vals = jnp.transpose(vals, (0, 1, 3, 5, 2, 4, 6))
    return vals.reshape(KD, H * W * Cin, H * W * Cout)


def resblock2_stack_forward(x_ncdhw, w1_list, b1_list, w2_list, b2_list):
    """x_ncdhw: (N, C, D, H, W); w*_list[l]: (C, C, 3, 3, 3); b*_list[l]: (C,)."""
    N, C, D, H, W = x_ncdhw.shape
    P = H * W * C
    L = len(w1_list)

    # Layout plumbing: NCDHW -> (N, D, H*W*C) lane-dense slab (depth padding is done
    # in-kernel, so no padded copy is materialized here).
    x_ndp = jnp.transpose(x_ncdhw, (0, 2, 3, 4, 1)).reshape(N, D, P)

    # Weight preprocessing (once at model-load time in a real model): banded weights,
    # depth taps stacked along K, stored as bf16 (dominant HBM traffic of this kernel).
    w1_cat = jnp.stack([_band_weights(w, H, W).reshape(K * P, P) for w in w1_list]
                       ).astype(jnp.bfloat16)                       # (L, 3P, P)
    w2_cat = jnp.stack([_band_weights(w, H, W).reshape(K * P, P) for w in w2_list]
                       ).astype(jnp.bfloat16)
    b1_cat = jnp.stack([jnp.tile(b, H * W).reshape(1, P) for b in b1_list]
                       ).astype(jnp.float32)                        # (L, 1, P)
    b2_cat = jnp.stack([jnp.tile(b, H * W).reshape(1, P) for b in b2_list]
                       ).astype(jnp.float32)

    flops = L * 2 * (2 * (N * D) * (K * P) * P)           # 2 matmuls per layer
    bytes_accessed = (2 * x_ndp.size * 4                   # activations in + out
                      + (w1_cat.size + w2_cat.size) * 2    # bf16 banded weights
                      + (b1_cat.size + b2_cat.size) * 4)

    out = pl.pallas_call(
        _resblock_stack_kernel,
        out_shape=jax.ShapeDtypeStruct((N, D, P), x_ncdhw.dtype),
        grid_spec=pltpu.PrefetchScalarGridSpec(
            num_scalar_prefetch=0,
            grid=(L,),                                    # one step per ResBlock_2 layer
            in_specs=[
                pl.BlockSpec((N, D, P),     lambda l: (0, 0, 0)),   # x: fetched once
                pl.BlockSpec((1, K * P, P), lambda l: (l, 0, 0)),   # conv1 weights (bf16)
                pl.BlockSpec((1, 1, P),     lambda l: (l, 0, 0)),   # conv1 bias
                pl.BlockSpec((1, K * P, P), lambda l: (l, 0, 0)),   # conv2 weights (bf16)
                pl.BlockSpec((1, 1, P),     lambda l: (l, 0, 0)),   # conv2 bias
            ],
            out_specs=pl.BlockSpec((N, D, P), lambda l: (0, 0, 0)),  # resident carry
            scratch_shapes=[pltpu.VMEM((N, D + 2, P), jnp.float32)],
        ),
        # Layer axis carries the activation -> sequential ("arbitrary"); this also keeps
        # the weight DMA from being duplicated across v7x's two TensorCores.
        compiler_params=pltpu.CompilerParams(dimension_semantics=("arbitrary",)),
        cost_estimate=pl.CostEstimate(flops=flops, transcendentals=0,
                                      bytes_accessed=bytes_accessed),
    )(x_ndp, w1_cat, b1_cat, w2_cat, b2_cat)

    # back to NCDHW
    return jnp.transpose(out.reshape(N, D, H, W, C), (0, 4, 1, 2, 3))


# ---- pure-numpy float64 reference (direct 27-tap conv, device-independent) ----------
def _conv3d_ref_np(x_ndhwc, w_oikkk, b):
    N, D, H, W, _ = x_ndhwc.shape
    Co = w_oikkk.shape[0]
    xp = np.pad(x_ndhwc, ((0, 0), (1, 1), (1, 1), (1, 1), (0, 0)))
    out = np.zeros((N, D, H, W, Co), np.float64)
    for kd in range(K):
        for kh in range(K):
            for kw in range(K):
                out += np.einsum('ndhwc,oc->ndhwo',
                                 xp[:, kd:kd + D, kh:kh + H, kw:kw + W, :],
                                 w_oikkk[:, :, kd, kh, kw])
    return out + b


def _resblock_stack_ref_np(x_ncdhw, w1s, b1s, w2s, b2s):
    y = np.transpose(np.asarray(x_ncdhw, np.float64), (0, 2, 3, 4, 1))
    for w1, b1, w2, b2 in zip(w1s, b1s, w2s, b2s):
        h = _conv3d_ref_np(y, np.asarray(w1, np.float64), np.asarray(b1, np.float64))
        h = np.where(h >= 0, h, NEG_SLOPE * h)
        h = _conv3d_ref_np(h, np.asarray(w2, np.float64), np.asarray(b2, np.float64))
        y = y + h
    return np.transpose(y, (0, 4, 1, 2, 3))


if __name__ == "__main__":
    # residual_learning_2 = make_ResBlock_2(layer_num=4, an2, kernel_size=(3,3,3));
    # small test shapes consistent with the module.
    an2 = 4
    L = 4
    N, D, H, W = 2, 8, 8, 8
    ks = (3, 3, 3)

    key = jax.random.PRNGKey(0)
    keys = jax.random.split(key, 2 * L + 1)
    x = jax.random.normal(keys[0], (N, an2, D, H, W), jnp.float32)        # NCDHW

    w1s, b1s, w2s, b2s = [], [], [], []
    for l in range(L):
        if l == 0:
            sigma = math.sqrt(2 / (1 * an2 * ks[0] * ks[1] * ks[2]))
        else:
            sigma = math.sqrt(2 / (an2 * an2 * ks[0] * ks[1] * ks[2]))
        w1s.append(sigma * jax.random.normal(keys[1 + 2 * l], (an2, an2, 3, 3, 3), jnp.float32))
        w2s.append(sigma * jax.random.normal(keys[2 + 2 * l], (an2, an2, 3, 3, 3), jnp.float32))
        b1s.append(jnp.zeros((an2,), jnp.float32))                        # bias.fill_(0)
        b2s.append(jnp.zeros((an2,), jnp.float32))

    out = resblock2_stack_forward(x, w1s, b1s, w2s, b2s)
    out = jax.block_until_ready(out)
    assert out.shape == x.shape
    out_np = np.asarray(out, np.float64)

    # Tight check: reference using the same bf16-quantized weights (proves the banded
    # im2col / deep-K matmul / carry pipeline is computing the right thing).
    w1q = [w.astype(jnp.bfloat16).astype(jnp.float32) for w in w1s]
    w2q = [w.astype(jnp.bfloat16).astype(jnp.float32) for w in w2s]
    ref_q = _resblock_stack_ref_np(x, w1q, b1s, w2q, b2s)
    err_q = float(np.max(np.abs(out_np - ref_q)))
    assert err_q < 1e-3, err_q

    # Loose check vs the full-f32-weight reference: documents the bf16 weight
    # compression error (expected ~1e-2 absolute at these magnitudes).
    ref_f = _resblock_stack_ref_np(x, w1s, b1s, w2s, b2s)
    err_f = float(np.max(np.abs(out_np - ref_f)))
    assert err_f < 1e-1, err_f

    print("KERNEL_OK")
</pallas_src>

<mosaic_0001>
module attributes {stable_mosaic.version = 11 : i64} {
  func.func @_resblock_stack_kernel(%arg0: i32, %arg1: memref<2x8x256xf32, #tpu.memory_space<vmem>>, %arg2: memref<1x768x256xbf16, #tpu.memory_space<vmem>>, %arg3: memref<1x1x256xf32, #tpu.memory_space<vmem>>, %arg4: memref<1x768x256xbf16, #tpu.memory_space<vmem>>, %arg5: memref<1x1x256xf32, #tpu.memory_space<vmem>>, %arg6: memref<2x8x256xf32, #tpu.memory_space<vmem>>, %arg7: memref<2x10x256xf32, #tpu.memory_space<vmem>>) attributes {dimension_semantics = [#tpu.dimension_semantics<arbitrary>], iteration_bounds = array<i64: 4>, scalar_prefetch = 0 : i64, scratch_operands = 1 : i64, tpu.core_type = #tpu.core_type<tc>, window_params = [{pipeline_mode = #tpu.pipeline_mode<synchronous>, transform_indices = @transform_0, window_bounds = array<i64: 2, 8, 256>}, {transform_indices = @transform_1, window_bounds = array<i64: 1, 768, 256>}, {transform_indices = @transform_2, window_bounds = array<i64: 1, 1, 256>}, {transform_indices = @transform_3, window_bounds = array<i64: 1, 768, 256>}, {transform_indices = @transform_4, window_bounds = array<i64: 1, 1, 256>}, {pipeline_mode = #tpu.pipeline_mode<synchronous>, transform_indices = @transform_5, window_bounds = array<i64: 2, 8, 256>}]} {
    %c0_i32 = arith.constant 0 : i32
    %0 = arith.cmpi eq, %arg0, %c0_i32 : i32
    %1 = arith.extui %0 : i1 to i32
    %c0_i32_0 = arith.constant 0 : i32
    %2 = arith.cmpi ne, %1, %c0_i32_0 : i32
    scf.if %2 {
      %c0_43 = arith.constant 0 : index
      %c0_44 = arith.constant 0 : index
      %c0_45 = arith.constant 0 : index
      %45 = vector.load %arg1[%c0_43, %c0_44, %c0_45] : memref<2x8x256xf32, #tpu.memory_space<vmem>>, vector<2x8x256xf32>
      %c0_46 = arith.constant 0 : index
      %c0_47 = arith.constant 0 : index
      %c0_48 = arith.constant 0 : index
      %46 = vector.load %arg6[%c0_46, %c0_47, %c0_48] : memref<2x8x256xf32, #tpu.memory_space<vmem>>, vector<2x8x256xf32>
      tpu.vector_store %arg6[%c0_46, %c0_47, %c0_48], %45 {strides = array<i32>} : memref<2x8x256xf32, #tpu.memory_space<vmem>>, vector<2x8x256xf32>,
      %cst_49 = arith.constant 0.000000e+00 : f32
      %47 = vector.broadcast %cst_49 : f32 to vector<2x1x256xf32>
      %c0_50 = arith.constant 0 : index
      %c0_51 = arith.constant 0 : index
      %c0_52 = arith.constant 0 : index
      %48 = vector.load %arg7[%c0_50, %c0_51, %c0_52] : memref<2x10x256xf32, #tpu.memory_space<vmem>>, vector<2x1x256xf32>
      tpu.vector_store %arg7[%c0_50, %c0_51, %c0_52], %47 {strides = array<i32>} : memref<2x10x256xf32, #tpu.memory_space<vmem>>, vector<2x1x256xf32>,
      %c0_53 = arith.constant 0 : index
      %c9 = arith.constant 9 : index
      %c0_54 = arith.constant 0 : index
      %49 = vector.load %arg7[%c0_53, %c9, %c0_54] : memref<2x10x256xf32, #tpu.memory_space<vmem>>, vector<2x1x256xf32>
      tpu.vector_store %arg7[%c0_53, %c9, %c0_54], %47 {strides = array<i32>} : memref<2x10x256xf32, #tpu.memory_space<vmem>>, vector<2x1x256xf32>,
    } else {
    }
    %c0 = arith.constant 0 : index
    %c0_1 = arith.constant 0 : index
    %c0_2 = arith.constant 0 : index
    %3 = vector.load %arg6[%c0, %c0_1, %c0_2] : memref<2x8x256xf32, #tpu.memory_space<vmem>>, vector<2x8x256xf32>
    %c0_3 = arith.constant 0 : index
    %c1 = arith.constant 1 : index
    %c0_4 = arith.constant 0 : index
    %4 = vector.load %arg7[%c0_3, %c1, %c0_4] : memref<2x10x256xf32, #tpu.memory_space<vmem>>, vector<2x8x256xf32>
    tpu.vector_store %arg7[%c0_3, %c1, %c0_4], %3 {strides = array<i32>} : memref<2x10x256xf32, #tpu.memory_space<vmem>>, vector<2x8x256xf32>,
    %c0_5 = arith.constant 0 : index
    %c0_6 = arith.constant 0 : index
    %c0_7 = arith.constant 0 : index
    %5 = vector.load %arg7[%c0_5, %c0_6, %c0_7] : memref<2x10x256xf32, #tpu.memory_space<vmem>>, vector<2x8x256xf32>
    %6 = vector.shape_cast %5 : vector<2x8x256xf32> to vector<16x256xf32>
    %c0_8 = arith.constant 0 : index
    %c1_9 = arith.constant 1 : index
    %c0_10 = arith.constant 0 : index
    %7 = vector.load %arg7[%c0_8, %c1_9, %c0_10] : memref<2x10x256xf32, #tpu.memory_space<vmem>>, vector<2x8x256xf32>
    %8 = vector.shape_cast %7 : vector<2x8x256xf32> to vector<16x256xf32>
    %c0_11 = arith.constant 0 : index
    %c2 = arith.constant 2 : index
    %c0_12 = arith.constant 0 : index
    %9 = vector.load %arg7[%c0_11, %c2, %c0_12] : memref<2x10x256xf32, #tpu.memory_space<vmem>>, vector<2x8x256xf32>
    %10 = vector.shape_cast %9 : vector<2x8x256xf32> to vector<16x256xf32>
    %11 = tpu.concatenate %6, %8, %10 in 1 : vector<16x256xf32>, vector<16x256xf32>, vector<16x256xf32> -> vector<16x768xf32>
    %c0_13 = arith.constant 0 : index
    %c0_14 = arith.constant 0 : index
    %c0_15 = arith.constant 0 : index
    %12 = vector.load %arg2[%c0_13, %c0_14, %c0_15] : memref<1x768x256xbf16, #tpu.memory_space<vmem>>, vector<1x768x256xbf16>
    %13 = vector.shape_cast %12 : vector<1x768x256xbf16> to vector<768x256xbf16>
    %14 = arith.extf %13 : vector<768x256xbf16> to vector<768x256xf32>
    %cst = arith.constant dense<0.000000e+00> : vector<16x256xf32>
    %15 = tpu.matmul %11, %14, %cst {dimension_numbers = #tpu.dot_dimension_numbers<[1], [0], [0], [1], [0, 0, 1, 1], [], []>} : vector<16x768xf32>, vector<768x256xf32>, vector<16x256xf32> -> vector<16x256xf32>
    %c0_16 = arith.constant 0 : index
    %c0_17 = arith.constant 0 : index
    %c0_18 = arith.constant 0 : index
    %16 = vector.load %arg3[%c0_16, %c0_17, %c0_18] : memref<1x1x256xf32, #tpu.memory_space<vmem>>, vector<1x1x256xf32>
    %17 = vector.shape_cast %16 : vector<1x1x256xf32> to vector<1x256xf32>
    %18 = vector.broadcast %17 : vector<1x256xf32> to vector<16x256xf32>
    %19 = arith.addf %15, %18 : vector<16x256xf32>
    %cst_19 = arith.constant 0.000000e+00 : f32
    %20 = vector.broadcast %cst_19 : f32 to vector<16x256xf32>
    %21 = arith.cmpf oge, %19, %20 : vector<16x256xf32>
    %cst_20 = arith.constant 2.000000e-01 : f32
    %22 = vector.broadcast %cst_20 : f32 to vector<16x256xf32>
    %23 = arith.mulf %22, %19 : vector<16x256xf32>
    %24 = arith.select %21, %19, %23 : vector<16x256xi1>, vector<16x256xf32>
    %25 = vector.shape_cast %24 : vector<16x256xf32> to vector<2x8x256xf32>
    %c0_21 = arith.constant 0 : index
    %c1_22 = arith.constant 1 : index
    %c0_23 = arith.constant 0 : index
    %26 = vector.load %arg7[%c0_21, %c1_22, %c0_23] : memref<2x10x256xf32, #tpu.memory_space<vmem>>, vector<2x8x256xf32>
    tpu.vector_store %arg7[%c0_21, %c1_22, %c0_23], %25 {strides = array<i32>} : memref<2x10x256xf32, #tpu.memory_space<vmem>>, vector<2x8x256xf32>,
    %c0_24 = arith.constant 0 : index
    %c0_25 = arith.constant 0 : index
    %c0_26 = arith.constant 0 : index
    %27 = vector.load %arg7[%c0_24, %c0_25, %c0_26] : memref<2x10x256xf32, #tpu.memory_space<vmem>>, vector<2x8x256xf32>
    %28 = vector.shape_cast %27 : vector<2x8x256xf32> to vector<16x256xf32>
    %c0_27 = arith.constant 0 : index
    %c1_28 = arith.constant 1 : index
    %c0_29 = arith.constant 0 : index
    %29 = vector.load %arg7[%c0_27, %c1_28, %c0_29] : memref<2x10x256xf32, #tpu.memory_space<vmem>>, vector<2x8x256xf32>
    %30 = vector.shape_cast %29 : vector<2x8x256xf32> to vector<16x256xf32>
    %c0_30 = arith.constant 0 : index
    %c2_31 = arith.constant 2 : index
    %c0_32 = arith.constant 0 : index
    %31 = vector.load %arg7[%c0_30, %c2_31, %c0_32] : memref<2x10x256xf32, #tpu.memory_space<vmem>>, vector<2x8x256xf32>
    %32 = vector.shape_cast %31 : vector<2x8x256xf32> to vector<16x256xf32>
    %33 = tpu.concatenate %28, %30, %32 in 1 : vector<16x256xf32>, vector<16x256xf32>, vector<16x256xf32> -> vector<16x768xf32>
    %c0_33 = arith.constant 0 : index
    %c0_34 = arith.constant 0 : index
    %c0_35 = arith.constant 0 : index
    %34 = vector.load %arg4[%c0_33, %c0_34, %c0_35] : memref<1x768x256xbf16, #tpu.memory_space<vmem>>, vector<1x768x256xbf16>
    %35 = vector.shape_cast %34 : vector<1x768x256xbf16> to vector<768x256xbf16>
    %36 = arith.extf %35 : vector<768x256xbf16> to vector<768x256xf32>
    %cst_36 = arith.constant dense<0.000000e+00> : vector<16x256xf32>
    %37 = tpu.matmul %33, %36, %cst_36 {dimension_numbers = #tpu.dot_dimension_numbers<[1], [0], [0], [1], [0, 0, 1, 1], [], []>} : vector<16x768xf32>, vector<768x256xf32>, vector<16x256xf32> -> vector<16x256xf32>
    %c0_37 = arith.constant 0 : index
    %c0_38 = arith.constant 0 : index
    %c0_39 = arith.constant 0 : index
    %38 = vector.load %arg5[%c0_37, %c0_38, %c0_39] : memref<1x1x256xf32, #tpu.memory_space<vmem>>, vector<1x1x256xf32>
    %39 = vector.shape_cast %38 : vector<1x1x256xf32> to vector<1x256xf32>
    %40 = vector.broadcast %39 : vector<1x256xf32> to vector<16x256xf32>
    %41 = arith.addf %37, %40 : vector<16x256xf32>
    %42 = vector.shape_cast %41 : vector<16x256xf32> to vector<2x8x256xf32>
    %43 = arith.addf %3, %42 : vector<2x8x256xf32>
    %c0_40 = arith.constant 0 : index
    %c0_41 = arith.constant 0 : index
    %c0_42 = arith.constant 0 : index
    %44 = vector.load %arg6[%c0_40, %c0_41, %c0_42] : memref<2x8x256xf32, #tpu.memory_space<vmem>>, vector<2x8x256xf32>
    tpu.vector_store %arg6[%c0_40, %c0_41, %c0_42], %43 {strides = array<i32>} : memref<2x8x256xf32, #tpu.memory_space<vmem>>, vector<2x8x256xf32>,
    return
  }
  func.func @transform_0(%arg0: i32) -> (i32, i32, i32) {
    %c0_i32 = arith.constant 0 : i32
    %c0_i32_0 = arith.constant 0 : i32
    %c0_i32_1 = arith.constant 0 : i32
    %c0_i32_2 = arith.constant 0 : i32
    return %c0_i32, %c0_i32_0, %c0_i32_1 : i32, i32, i32
  }
  func.func @transform_1(%arg0: i32) -> (i32, i32, i32) {
    %c0_i32 = arith.constant 0 : i32
    %c0_i32_0 = arith.constant 0 : i32
    %c0_i32_1 = arith.constant 0 : i32
    return %arg0, %c0_i32, %c0_i32_0 : i32, i32, i32
  }
  func.func @transform_2(%arg0: i32) -> (i32, i32, i32) {
    %c0_i32 = arith.constant 0 : i32
    %c0_i32_0 = arith.constant 0 : i32
    %c0_i32_1 = arith.constant 0 : i32
    return %arg0, %c0_i32, %c0_i32_0 : i32, i32, i32
  }
  func.func @transform_3(%arg0: i32) -> (i32, i32, i32) {
    %c0_i32 = arith.constant 0 : i32
    %c0_i32_0 = arith.constant 0 : i32
    %c0_i32_1 = arith.constant 0 : i32
    return %arg0, %c0_i32, %c0_i32_0 : i32, i32, i32
  }
  func.func @transform_4(%arg0: i32) -> (i32, i32, i32) {
    %c0_i32 = arith.constant 0 : i32
    %c0_i32_0 = arith.constant 0 : i32
    %c0_i32_1 = arith.constant 0 : i32
    return %arg0, %c0_i32, %c0_i32_0 : i32, i32, i32
  }
  func.func @transform_5(%arg0: i32) -> (i32, i32, i32) {
    %c0_i32 = arith.constant 0 : i32
    %c0_i32_0 = arith.constant 0 : i32
    %c0_i32_1 = arith.constant 0 : i32
    %c0_i32_2 = arith.constant 0 : i32
    return %c0_i32, %c0_i32_0, %c0_i32_1 : i32, i32, i32
  }
}

</mosaic_0001>

<llo_original>
// kernel: tpu_custom_call.1
$region0: #{tpu_custom_call.1}
  #allocation0 [shape = 'u32[]', space=smem, size = 0x4, offset = 0x4, fixed_abs, tag = 'smem constant byte address 0x4 - core index']
  #allocation1 [shape = 'u32[144,128]{1,0:T(1,128)}', space=vmem, size = 0x12000, scoped, tag = 'internal scratch']
  #allocation2 [shape = 'f32[2,10,256]{2,1,0:T(8,128)}', space=vmem, size = 0x8000, scoped, tag = 'scratch operand']
  %s0 = inlined_call_operand.hbm [shape: f32[2,8,256], index: 0, kind: input, shape index: {}]
  %s1 = inlined_call_operand.hbm [shape: bf16[4,768,256], index: 1, kind: input, shape index: {}]
  %s2 = inlined_call_operand.hbm [shape: f32[4,1,256], index: 2, kind: input, shape index: {}]
  %s3 = inlined_call_operand.hbm [shape: bf16[4,768,256], index: 3, kind: input, shape index: {}]
  %s4 = inlined_call_operand.hbm [shape: f32[4,1,256], index: 4, kind: input, shape index: {}]
  %s5 = inlined_call_operand.hbm [shape: f32[2,8,256], index: 5, kind: output, shape index: {}]
  %s6 = sld [smem:[#allocation0]]
  $region77: #{tpu_custom_call.1} parent=0
    _
  %s8 = ssub.s32 1, %s6
  %s9 = scalar_select 0, %s8, %s6
  $region1: #{tpu_custom_call.1} parent=0
    #allocation3 [shape = 'u8[16384]{0}', space=vmem, size = 0x4000, scoped, tag = 'input window, operand 0, single buffered']
    #allocation4 [shape = 's32[2]{0}', space=sflag, size = 0x8, scoped, tag = 'scoped memory for tpu_custom_call.1']
    #allocation5 [shape = 's32[2]{0}', space=sflag, size = 0x8, scoped, tag = 'scoped memory for tpu_custom_call.1']
    #allocation6 [shape = 'u8[786432]{0}', space=vmem, size = 0xc0000, scoped, tag = 'input window, operand 1']
    #allocation7 [shape = 's32[2]{0}', space=sflag, size = 0x8, scoped, tag = 'scoped memory for tpu_custom_call.1']
    #allocation8 [shape = 'u8[2048]{0}', space=vmem, size = 0x800, scoped, tag = 'input window, operand 2']
    #allocation9 [shape = 'u8[786432]{0}', space=vmem, size = 0xc0000, scoped, tag = 'input window, operand 3']
    #allocation10 [shape = 's32[2]{0}', space=sflag, size = 0x8, scoped, tag = 'scoped memory for tpu_custom_call.1']
    #allocation11 [shape = 'u8[2048]{0}', space=vmem, size = 0x800, scoped, tag = 'input window, operand 4']
    #allocation12 [shape = 'u8[16384]{0}', space=vmem, size = 0x4000, scoped, tag = 'output window, operand 0, single buffered']
    %10 = vsyncpa [#allocation4], 0
    %11 = vsyncpa [#allocation7], 0
    %s12 = scalar_lea.sflag [#allocation7], 1
    %13 = vsyncpa %s12, 0
    %14 = vsyncpa [#allocation10], 0
    %s15 = scalar_lea.sflag [#allocation10], 1
    %16 = vsyncpa %s15, 0
    %17 = vsyncpa [#allocation5], 0
    loop: start=0, step=1, limit=6
    $region2: #{tpu_custom_call.1} parent=1 // loop_pre_header
      _
    $region3: #{tpu_custom_call.1} parent=1 // loop_header
      %s19 = sphi 0, %s23
      %p20 = scmp.ge.s32.totalorder %s19, 6
      %s27 = sphi 0, %s27
      %s29 = sphi 0, %s27
      %s30 = sphi 0, %s29
      %s44 = sphi 0, %s30
      %s50 = sphi 0, %s52
      %s53 = sphi 0, %s50
      %s54 = sphi 0, %s53
      %s70 = sphi 0, %s54
      %s76 = sphi 0, %s78
      %s79 = sphi 0, %s76
      %s80 = sphi 0, %s79
      %s96 = sphi 0, %s80
      %s102 = sphi 0, %s104
      %s105 = sphi 0, %s102
      %s106 = sphi 0, %s105
      %s122 = sphi 0, %s106
      %s128 = sphi 0, %s130
      %s131 = sphi 0, %s128
      %s132 = sphi 0, %s131
      %s148 = sphi 0, %s132
      %s152 = sphi 0, %s152
      %s154 = sphi 0, %s152
      %s155 = sphi 0, %s154
      %s169 = sphi 0, %s155
    $region4: #{tpu_custom_call.1} parent=1 // loop_header_branch
      %22 = sbr.rel (%p20) target = $region8
    $region5: #{tpu_custom_call.1} parent=1 // loop_body
      %s24 = ssub.s32 %s19, 1
      %s25 = ssub.s32 %s19, 2
      %s26 = sadd.s32 %s19, 1
      %s28 = sadd.s32 %s27, 1
      %p31 = scmp.eq.s32.totalorder %s19, 3
      %p32 = scmp.ne.s32.totalorder %s27, %s29
      %p33 = scmp.eq.s32.totalorder %s19, 0
      %p34 = por %p32, %p33
      %p35 = scmp.ne.s32.totalorder %s27, %s29
      %p36 = scmp.eq.s32.totalorder %s24, 3
      %p37 = por %p35, %p36
      %p38 = scmp.ne.s32.totalorder %s29, %s30
      %p39 = scmp.eq.s32.totalorder %s24, 0
      %p40 = por %p38, %p39
      %p41 = scmp.ne.s32.totalorder %s29, %s30
      %p42 = scmp.eq.s32.totalorder %s25, 3
      %p43 = por %p41, %p42
      %p45 = scmp.ne.s32.totalorder %s30, %s44
      %p46 = scmp.eq.s32.totalorder %s25, 0
      %p47 = por %p45, %p46
      %s48 = ssub.s32 %s19, %s26
      %p49 = scmp.eq.s32.totalorder %s48, 0
      %s51 = sadd.s32 %s50, 1
      %s52 = scalar_select %p49, %s50, %s51
      %p55 = pneg %p49
      %p56 = scmp.eq.s32.totalorder %s19, 3
      %p57 = por %p55, %p56
      %p58 = scmp.ne.s32.totalorder %s50, %s53
      %p59 = scmp.eq.s32.totalorder %s19, 0
      %p60 = por %p58, %p59
      %p61 = scmp.ne.s32.totalorder %s50, %s53
      %p62 = scmp.eq.s32.totalorder %s24, 3
      %p63 = por %p61, %p62
      %p64 = scmp.ne.s32.totalorder %s53, %s54
      %p65 = scmp.eq.s32.totalorder %s24, 0
      %p66 = por %p64, %p65
      %p67 = scmp.ne.s32.totalorder %s53, %s54
      %p68 = scmp.eq.s32.totalorder %s25, 3
      %p69 = por %p67, %p68
      %p71 = scmp.ne.s32.totalorder %s54, %s70
      %p72 = scmp.eq.s32.totalorder %s25, 0
      %p73 = por %p71, %p72
      %s74 = ssub.s32 %s19, %s26
      %p75 = scmp.eq.s32.totalorder %s74, 0
      %s77 = sadd.s32 %s76, 1
      %s78 = scalar_select %p75, %s76, %s77
      %p81 = pneg %p75
      %p82 = scmp.eq.s32.totalorder %s19, 3
      %p83 = por %p81, %p82
      %p84 = scmp.ne.s32.totalorder %s76, %s79
      %p85 = scmp.eq.s32.totalorder %s19, 0
      %p86 = por %p84, %p85
      %p87 = scmp.ne.s32.totalorder %s76, %s79
      %p88 = scmp.eq.s32.totalorder %s24, 3
      %p89 = por %p87, %p88
      %p90 = scmp.ne.s32.totalorder %s79, %s80
      %p91 = scmp.eq.s32.totalorder %s24, 0
      %p92 = por %p90, %p91
      %p93 = scmp.ne.s32.totalorder %s79, %s80
      %p94 = scmp.eq.s32.totalorder %s25, 3
      %p95 = por %p93, %p94
      %p97 = scmp.ne.s32.totalorder %s80, %s96
      %p98 = scmp.eq.s32.totalorder %s25, 0
      %p99 = por %p97, %p98
      %s100 = ssub.s32 %s19, %s26
      %p101 = scmp.eq.s32.totalorder %s100, 0
      %s103 = sadd.s32 %s102, 1
      %s104 = scalar_select %p101, %s102, %s103
      %p107 = pneg %p101
      %p108 = scmp.eq.s32.totalorder %s19, 3
      %p109 = por %p107, %p108
      %p110 = scmp.ne.s32.totalorder %s102, %s105
      %p111 = scmp.eq.s32.totalorder %s19, 0
      %p112 = por %p110, %p111
      %p113 = scmp.ne.s32.totalorder %s102, %s105
      %p114 = scmp.eq.s32.totalorder %s24, 3
      %p115 = por %p113, %p114
      %p116 = scmp.ne.s32.totalorder %s105, %s106
      %p117 = scmp.eq.s32.totalorder %s24, 0
      %p118 = por %p116, %p117
      %p119 = scmp.ne.s32.totalorder %s105, %s106
      %p120 = scmp.eq.s32.totalorder %s25, 3
      %p121 = por %p119, %p120
      %p123 = scmp.ne.s32.totalorder %s106, %s122
      %p124 = scmp.eq.s32.totalorder %s25, 0
      %p125 = por %p123, %p124
      %s126 = ssub.s32 %s19, %s26
      %p127 = scmp.eq.s32.totalorder %s126, 0
      %s129 = sadd.s32 %s128, 1
      %s130 = scalar_select %p127, %s128, %s129
      %p133 = pneg %p127
      %p134 = scmp.eq.s32.totalorder %s19, 3
      %p135 = por %p133, %p134
      %p136 = scmp.ne.s32.totalorder %s128, %s131
      %p137 = scmp.eq.s32.totalorder %s19, 0
      %p138 = por %p136, %p137
      %p139 = scmp.ne.s32.totalorder %s128, %s131
      %p140 = scmp.eq.s32.totalorder %s24, 3
      %p141 = por %p139, %p140
      %p142 = scmp.ne.s32.totalorder %s131, %s132
      %p143 = scmp.eq.s32.totalorder %s24, 0
      %p144 = por %p142, %p143
      %p145 = scmp.ne.s32.totalorder %s131, %s132
      %p146 = scmp.eq.s32.totalorder %s25, 3
      %p147 = por %p145, %p146
      %p149 = scmp.ne.s32.totalorder %s132, %s148
      %p150 = scmp.eq.s32.totalorder %s25, 0
      %p151 = por %p149, %p150
      %s153 = sadd.s32 %s152, 1
      %p156 = scmp.eq.s32.totalorder %s19, 3
      %p157 = scmp.ne.s32.totalorder %s152, %s154
      %p158 = scmp.eq.s32.totalorder %s19, 0
      %p159 = por %p157, %p158
      %p160 = scmp.ne.s32.totalorder %s152, %s154
      %p161 = scmp.eq.s32.totalorder %s24, 3
      %p162 = por %p160, %p161
      %p163 = scmp.ne.s32.totalorder %s154, %s155
      %p164 = scmp.eq.s32.totalorder %s24, 0
      %p165 = por %p163, %p164
      %p166 = scmp.ne.s32.totalorder %s154, %s155
      %p167 = scmp.eq.s32.totalorder %s25, 3
      %p168 = por %p166, %p167
      %p170 = scmp.ne.s32.totalorder %s155, %s169
      %p171 = scmp.eq.s32.totalorder %s25, 0
      %p172 = por %p170, %p171
      %p173 = scmp.le.s32.totalorder 1, %s19
      %p174 = scmp.lt.s32.totalorder %s19, 5
      %p175 = pnand %p173, %p174
      %p176 = pneg %p175
      // Predicated region
      $region9: #{tpu_custom_call.1} parent=5 // pred_check
        _
      $region10: #{tpu_custom_call.1} parent=5 // pred_check_branch
        %178 = sbr.rel (%p175) target = $region12
      $region11: #{tpu_custom_call.1} parent=5 // pred_region
        %s179 = ssub.s32 %s19, 1
        // Predicated region
        $region13: #{tpu_custom_call.1} parent=11 // pred_check
          %p180 = pneg %p40
        $region14: #{tpu_custom_call.1} parent=11 // pred_check_branch
          %182 = sbr.rel (%p180) target = $region16
        $region15: #{tpu_custom_call.1} parent=11 // pred_region
          %s184 = ssub.s32 512, 512
          %185 = vsyncadd [#allocation4], %s184
          %s186 = sshll.u32 [#allocation3], 4
          %s187 = int_to_ptr.vmem [resolvable:$true] %s186
          %192 = dma.hbm_to_vmem [thread:$0]  %s0, 512, %s187, [#allocation4], 256, 256, 16
        $region16: #{tpu_custom_call.1} parent=11 // pred_fallthru
          _
      $region12: #{tpu_custom_call.1} parent=5 // pred_fallthru
        _
      %p193 = scmp.lt.s32.totalorder %s19, 4
      // Predicated region
      $region17: #{tpu_custom_call.1} parent=5 // pred_check
        %p194 = pneg %p193
      $region18: #{tpu_custom_call.1} parent=5 // pred_check_branch
        %196 = sbr.rel (%p194) target = $region20
      $region19: #{tpu_custom_call.1} parent=5 // pred_region
        // Predicated region
        $region21: #{tpu_custom_call.1} parent=19 // pred_check
          %p197 = pneg %p60
        $region22: #{tpu_custom_call.1} parent=19 // pred_check_branch
          %199 = sbr.rel (%p197) target = $region24
        $region23: #{tpu_custom_call.1} parent=19 // pred_region
          %s200 = sand.u32 %s19, 1
          %s201 = scalar_lea.sflag [#allocation7], %s200
          %s202 = sand.u32 %s50, 1
          %s203 = smul.addr %s202, 768
          %s204 = scalar_lea.vmem [#allocation6], %s203
          %s206 = ssub.s32 12288, 12288
          %207 = vsyncadd %s201, %s206
          %s208 = smul.addr %s19, 192
          %s209 = smul.addr %s208, 64
          %s210 = scalar_lea.hbm %s1, %s209
          %s211 = sshll.u32 %s204, 4
          %s212 = int_to_ptr.vmem [resolvable:$true] %s211
          %217 = dma.hbm_to_vmem [thread:$0]  %s210, 12288, %s212, %s201, 128, 128, 8
        $region24: #{tpu_custom_call.1} parent=19 // pred_fallthru
          _
        // Predicated region
        $region25: #{tpu_custom_call.1} parent=19 // pred_check
          %p218 = pneg %p86
        $region26: #{tpu_custom_call.1} parent=19 // pred_check_branch
          %220 = sbr.rel (%p218) target = $region28
        $region27: #{tpu_custom_call.1} parent=19 // pred_region
          %s221 = sand.u32 %s19, 1
          %s222 = scalar_lea.sflag [#allocation7], %s221
          %s223 = sand.u32 %s76, 1
          %s224 = smul.addr %s223, 2
          %s225 = scalar_lea.vmem [#allocation8], %s224
          %s227 = ssub.s32 32, 32
          %228 = vsyncadd %s222, %s227
          %s229 = smul.addr %s19, 2
          %s230 = smul.addr %s229, 16
          %s231 = scalar_lea.hbm %s2, %s230
          %s233 = sshll.u32 %s225, 4
          %s234 = int_to_ptr.vmem [resolvable:$true] %s233
          %236 = dma.hbm_to_vmem [thread:$0]  %s231, 32, %s234, %s222
        $region28: #{tpu_custom_call.1} parent=19 // pred_fallthru
          _
        // Predicated region
        $region29: #{tpu_custom_call.1} parent=19 // pred_check
          %p237 = pneg %p112
        $region30: #{tpu_custom_call.1} parent=19 // pred_check_branch
          %239 = sbr.rel (%p237) target = $region32
        $region31: #{tpu_custom_call.1} parent=19 // pred_region
          %s240 = sand.u32 %s19, 1
          %s241 = scalar_lea.sflag [#allocation10], %s240
          %s242 = sand.u32 %s102, 1
          %s243 = smul.addr %s242, 768
          %s244 = scalar_lea.vmem [#allocation9], %s243
          %s246 = ssub.s32 12288, 12288
          %247 = vsyncadd %s241, %s246
          %s248 = smul.addr %s19, 192
          %s249 = smul.addr %s248, 64
          %s250 = scalar_lea.hbm %s3, %s249
          %s251 = sshll.u32 %s244, 4
          %s252 = int_to_ptr.vmem [resolvable:$true] %s251
          %257 = dma.hbm_to_vmem [thread:$0]  %s250, 12288, %s252, %s241, 128, 128, 8
        $region32: #{tpu_custom_call.1} parent=19 // pred_fallthru
          _
        // Predicated region
        $region33: #{tpu_custom_call.1} parent=19 // pred_check
          %p258 = pneg %p138
        $region34: #{tpu_custom_call.1} parent=19 // pred_check_branch
          %260 = sbr.rel (%p258) target = $region36
        $region35: #{tpu_custom_call.1} parent=19 // pred_region
          %s261 = sand.u32 %s19, 1
          %s262 = scalar_lea.sflag [#allocation10], %s261
          %s263 = sand.u32 %s128, 1
          %s264 = smul.addr %s263, 2
          %s265 = scalar_lea.vmem [#allocation11], %s264
          %s267 = ssub.s32 32, 32
          %268 = vsyncadd %s262, %s267
          %s269 = smul.addr %s19, 2
          %s270 = smul.addr %s269, 16
          %s271 = scalar_lea.hbm %s4, %s270
          %s273 = sshll.u32 %s265, 4
          %s274 = int_to_ptr.vmem [resolvable:$true] %s273
          %276 = dma.hbm_to_vmem [thread:$0]  %s271, 32, %s274, %s262
        $region36: #{tpu_custom_call.1} parent=19 // pred_fallthru
          _
      $region20: #{tpu_custom_call.1} parent=5 // pred_fallthru
        _
      %p277 = scmp.le.s32.totalorder 1, %s19
      %p278 = scmp.lt.s32.totalorder %s19, 5
      %p279 = pnand %p277, %p278
      %p280 = pneg %p279
      // Predicated region
      $region37: #{tpu_custom_call.1} parent=5 // pred_check
        _
      $region38: #{tpu_custom_call.1} parent=5 // pred_check_branch
        %282 = sbr.rel (%p279) target = $region40
      $region39: #{tpu_custom_call.1} parent=5 // pred_region
        %s283 = ssub.s32 %s19, 1
        // Predicated region
        $region41: #{tpu_custom_call.1} parent=39 // pred_check
          %p284 = pneg %p40
        $region42: #{tpu_custom_call.1} parent=39 // pred_check_branch
          %286 = sbr.rel (%p284) target = $region44
        $region43: #{tpu_custom_call.1} parent=39 // pred_region
          %287 = dma.done [#allocation4], 512
        $region44: #{tpu_custom_call.1} parent=39 // pred_fallthru
          _
        %s288 = sand.u32 %s24, 1
        %s289 = scalar_lea.sflag [#allocation7], %s288
        %s290 = sand.u32 %s53, 1
        %s291 = smul.addr %s290, 768
        %s292 = scalar_lea.vmem [#allocation6], %s291
        // Predicated region
        $region45: #{tpu_custom_call.1} parent=39 // pred_check
          %p293 = pneg %p66
        $region46: #{tpu_custom_call.1} parent=39 // pred_check_branch
          %295 = sbr.rel (%p293) target = $region48
        $region47: #{tpu_custom_call.1} parent=39 // pred_region
          %296 = dma.done %s289, 12288
        $region48: #{tpu_custom_call.1} parent=39 // pred_fallthru
          _
        %s297 = sand.u32 %s24, 1
        %s298 = scalar_lea.sflag [#allocation7], %s297
        %s299 = sand.u32 %s79, 1
        %s300 = smul.addr %s299, 2
        %s301 = scalar_lea.vmem [#allocation8], %s300
        // Predicated region
        $region49: #{tpu_custom_call.1} parent=39 // pred_check
          %p302 = pneg %p92
        $region50: #{tpu_custom_call.1} parent=39 // pred_check_branch
          %304 = sbr.rel (%p302) target = $region52
        $region51: #{tpu_custom_call.1} parent=39 // pred_region
          %305 = dma.done %s298, 32
        $region52: #{tpu_custom_call.1} parent=39 // pred_fallthru
          _
        %s306 = sand.u32 %s24, 1
        %s307 = scalar_lea.sflag [#allocation10], %s306
        %s308 = sand.u32 %s105, 1
        %s309 = smul.addr %s308, 768
        %s310 = scalar_lea.vmem [#allocation9], %s309
        // Predicated region
        $region53: #{tpu_custom_call.1} parent=39 // pred_check
          %p311 = pneg %p118
        $region54: #{tpu_custom_call.1} parent=39 // pred_check_branch
          %313 = sbr.rel (%p311) target = $region56
        $region55: #{tpu_custom_call.1} parent=39 // pred_region
          %314 = dma.done %s307, 12288
        $region56: #{tpu_custom_call.1} parent=39 // pred_fallthru
          _
        %s315 = sand.u32 %s24, 1
        %s316 = scalar_lea.sflag [#allocation10], %s315
        %s317 = sand.u32 %s131, 1
        %s318 = smul.addr %s317, 2
        %s319 = scalar_lea.vmem [#allocation11], %s318
        // Predicated region
        $region57: #{tpu_custom_call.1} parent=39 // pred_check
          %p320 = pneg %p144
        $region58: #{tpu_custom_call.1} parent=39 // pred_check_branch
          %322 = sbr.rel (%p320) target = $region60
        $region59: #{tpu_custom_call.1} parent=39 // pred_region
          %323 = dma.done %s316, 32
        $region60: #{tpu_custom_call.1} parent=39 // pred_fallthru
          _
        %p324 = pneg %p40
        %p325 = pneg %p37
        %s326 = sand.u32 %s24, 1
        %s327 = scalar_lea.sflag [#allocation7], %s326
        %s328 = sand.u32 %s53, 1
        %s329 = smul.addr %s328, 768
        %s330 = scalar_lea.vmem [#allocation6], %s329
        %p331 = pneg %p66
        %p332 = pneg %p63
        %s333 = sand.u32 %s24, 1
        %s334 = scalar_lea.sflag [#allocation7], %s333
        %s335 = sand.u32 %s79, 1
        %s336 = smul.addr %s335, 2
        %s337 = scalar_lea.vmem [#allocation8], %s336
        %p338 = pneg %p92
        %p339 = pneg %p89
        %s340 = sand.u32 %s24, 1
        %s341 = scalar_lea.sflag [#allocation10], %s340
        %s342 = sand.u32 %s105, 1
        %s343 = smul.addr %s342, 768
        %s344 = scalar_lea.vmem [#allocation9], %s343
        %p345 = pneg %p118
        %p346 = pneg %p115
        %s347 = sand.u32 %s24, 1
        %s348 = scalar_lea.sflag [#allocation10], %s347
        %s349 = sand.u32 %s131, 1
        %s350 = smul.addr %s349, 2
        %s351 = scalar_lea.vmem [#allocation11], %s350
        %p352 = pneg %p144
        %p353 = pneg %p141
        %p354 = pneg %p165
        %p355 = pneg %p162
        %p356 = scmp.eq.s32.totalorder %s24, 0
        // Predicated region
        $region61: #{tpu_custom_call.1} parent=39 // pred_check
          %p357 = pneg %p356
        $region62: #{tpu_custom_call.1} parent=39 // pred_check_branch
          %359 = sbr.rel (%p357) target = $region64
        $region63: #{tpu_custom_call.1} parent=39 // pred_region
          %v360 = vld [vmem:[#allocation3] sm:$0xff]
          %v361 = vld [vmem:[#allocation3 + $0x8] sm:$0xff]
          %v362 = vld [vmem:[#allocation3 + $0x10] sm:$0xff]
          %v363 = vld [vmem:[#allocation3 + $0x18] sm:$0xff]
          %364 = vst [vmem:[#allocation12] sm:$0xff] %v360
          %365 = vst [vmem:[#allocation12 + $0x8] sm:$0xff] %v361
          %366 = vst [vmem:[#allocation12 + $0x10] sm:$0xff] %v362
          %367 = vst [vmem:[#allocation12 + $0x18] sm:$0xff] %v363
          %v368 = vlaneseq
          %vm369 = vcmp.ge.s32.totalorder %v368, 0
          %vm370 = vcmp.lt.s32.totalorder %v368, 256
          %vm371 = vmand %vm369, %vm370
          %372 = vst.msk [vmem:[#allocation2] ss:$8 sm:$0x3] %vm371, 0.0
          %373 = vst.msk [vmem:[#allocation2] ss:$8 sm:$0x0] %vm371, 0.0
          %s374 = scalar_lea.vmem [#allocation2], 32
          %375 = vst.msk [vmem:[%s374] ss:$8 sm:$0x3] %vm371, 0.0
          %376 = vst.msk [vmem:[%s374] ss:$8 sm:$0x0] %vm371, 0.0
          %s377 = scalar_lea.vmem [#allocation2], 17
          %378 = vst.msk [vmem:[%s377] ss:$8 sm:$0x3] %vm371, 0.0
          %379 = vst.msk [vmem:[%s377] ss:$8 sm:$0x0] %vm371, 0.0
          %s380 = scalar_lea.vmem [#allocation2], 49
          %381 = vst.msk [vmem:[%s380] ss:$8 sm:$0x3] %vm371, 0.0
          %382 = vst.msk [vmem:[%s380] ss:$8 sm:$0x0] %vm371, 0.0
        $region64: #{tpu_custom_call.1} parent=39 // pred_fallthru
          _
        %v383 = vld [vmem:[#allocation12] sm:$0xff]
        %v384 = vld [vmem:[#allocation12 + $0x8] sm:$0xff]
        %v385 = vld [vmem:[#allocation12 + $0x10] sm:$0xff]
        %v386 = vld [vmem:[#allocation12 + $0x18] sm:$0xff]
        %v391 = vrot.slane %v383, 7
        %v392 = vrot.slane %v384, 7
        %v393 = vrot.slane %v385, 7
        %v394 = vrot.slane %v386, 7
        %399 = vst [vmem:[#allocation2] sm:$0xfe] %v391
        %400 = vst [vmem:[#allocation2 + $0x8] sm:$0xfe] %v392
        %401 = vst [vmem:[#allocation2 + $0x10] sm:$0x1] %v391
        %402 = vst [vmem:[#allocation2 + $0x18] sm:$0x1] %v392
        %403 = vst [vmem:[#allocation2 + $0x20] sm:$0xfe] %v393
        %404 = vst [vmem:[#allocation2 + $0x28] sm:$0xfe] %v394
        %405 = vst [vmem:[#allocation2 + $0x30] sm:$0x1] %v393
        %406 = vst [vmem:[#allocation2 + $0x38] sm:$0x1] %v394
        %v407 = vld [vmem:[#allocation2] sm:$0xff]
        %v408 = vld [vmem:[#allocation2 + $0x8] sm:$0xff]
        %v409 = vld [vmem:[#allocation2 + $0x20] sm:$0xff]
        %v410 = vld [vmem:[#allocation2 + $0x28] sm:$0xff]
        %v411 = vld [vmem:[#allocation2] sm:$0xfe]
        %v412 = vld [vmem:[#allocation2 + $0x8] sm:$0xfe]
        %v413 = vld [vmem:[#allocation2 + $0x10] sm:$0x1]
        %v414 = vld [vmem:[#allocation2 + $0x18] sm:$0x1]
        %v415 = vld [vmem:[#allocation2 + $0x20] sm:$0xfe]
        %v416 = vld [vmem:[#allocation2 + $0x28] sm:$0xfe]
        %v417 = vld [vmem:[#allocation2 + $0x30] sm:$0x1]
        %v418 = vld [vmem:[#allocation2 + $0x38] sm:$0x1]
        %vm427 = vcmask 1046528
        %v428 = vrot.slane %v411, 1
        %v429 = vrot.slane %v413, 1
        %v430 = vsel %vm427, %v428, %v429
        %v431 = vrot.slane %v412, 1
        %v432 = vrot.slane %v414, 1
        %v433 = vsel %vm427, %v431, %v432
        %v434 = vrot.slane %v415, 1
        %v435 = vrot.slane %v417, 1
        %v436 = vsel %vm427, %v434, %v435
        %v437 = vrot.slane %v416, 1
        %v438 = vrot.slane %v418, 1
        %v439 = vsel %vm427, %v437, %v438
        %v444 = vld [vmem:[#allocation2] sm:$0xfc]
        %v445 = vld [vmem:[#allocation2 + $0x8] sm:$0xfc]
        %v446 = vld [vmem:[#allocation2 + $0x10] sm:$0x3]
        %v447 = vld [vmem:[#allocation2 + $0x18] sm:$0x3]
        %v448 = vld [vmem:[#allocation2 + $0x20] sm:$0xfc]
        %v449 = vld [vmem:[#allocation2 + $0x28] sm:$0xfc]
        %v450 = vld [vmem:[#allocation2 + $0x30] sm:$0x3]
        %v451 = vld [vmem:[#allocation2 + $0x38] sm:$0x3]
        %vm460 = vcmask 1045504
        %v461 = vrot.slane %v444, 2
        %v462 = vrot.slane %v446, 2
        %v463 = vsel %vm460, %v461, %v462
        %v464 = vrot.slane %v445, 2
        %v465 = vrot.slane %v447, 2
        %v466 = vsel %vm460, %v464, %v465
        %v467 = vrot.slane %v448, 2
        %v468 = vrot.slane %v450, 2
        %v469 = vsel %vm460, %v467, %v468
        %v470 = vrot.slane %v449, 2
        %v471 = vrot.slane %v451, 2
        %v472 = vsel %vm460, %v470, %v471
        %v477 = vld [vmem:[%s292] sm:$0xff]
        %v478 = vld [vmem:[%s292 + $0x8] sm:$0xff]
        %v479 = vld [vmem:[%s292 + $0x10] sm:$0xff]
        %v480 = vld [vmem:[%s292 + $0x18] sm:$0xff]
        %v481 = vld [vmem:[%s292 + $0x20] sm:$0xff]
        %v482 = vld [vmem:[%s292 + $0x28] sm:$0xff]
        %v483 = vld [vmem:[%s292 + $0x30] sm:$0xff]
        %v484 = vld [vmem:[%s292 + $0x38] sm:$0xff]
        %v485 = vld [vmem:[%s292 + $0x40] sm:$0xff]
        %v486 = vld [vmem:[%s292 + $0x48] sm:$0xff]
        %v487 = vld [vmem:[%s292 + $0x50] sm:$0xff]
        %v488 = vld [vmem:[%s292 + $0x58] sm:$0xff]
        %v489 = vld [vmem:[%s292 + $0x60] sm:$0xff]
        %v490 = vld [vmem:[%s292 + $0x68] sm:$0xff]
        %v491 = vld [vmem:[%s292 + $0x70] sm:$0xff]
        %v492 = vld [vmem:[%s292 + $0x78] sm:$0xff]
        %v493 = vld [vmem:[%s292 + $0x80] sm:$0xff]
        %v494 = vld [vmem:[%s292 + $0x88] sm:$0xff]
        %v495 = vld [vmem:[%s292 + $0x90] sm:$0xff]
        %v496 = vld [vmem:[%s292 + $0x98] sm:$0xff]
        %v497 = vld [vmem:[%s292 + $0xa0] sm:$0xff]
        %v498 = vld [vmem:[%s292 + $0xa8] sm:$0xff]
        %v499 = vld [vmem:[%s292 + $0xb0] sm:$0xff]
        %v500 = vld [vmem:[%s292 + $0xb8] sm:$0xff]
        %v501 = vld [vmem:[%s292 + $0xc0] sm:$0xff]
        %v502 = vld [vmem:[%s292 + $0xc8] sm:$0xff]
        %v503 = vld [vmem:[%s292 + $0xd0] sm:$0xff]
        %v504 = vld [vmem:[%s292 + $0xd8] sm:$0xff]
        %v505 = vld [vmem:[%s292 + $0xe0] sm:$0xff]
        %v506 = vld [vmem:[%s292 + $0xe8] sm:$0xff]
        %v507 = vld [vmem:[%s292 + $0xf0] sm:$0xff]
        %v508 = vld [vmem:[%s292 + $0xf8] sm:$0xff]
        %v509 = vld [vmem:[%s292 + $0x100] sm:$0xff]
        %v510 = vld [vmem:[%s292 + $0x108] sm:$0xff]
        %v511 = vld [vmem:[%s292 + $0x110] sm:$0xff]
        %v512 = vld [vmem:[%s292 + $0x118] sm:$0xff]
        %v513 = vld [vmem:[%s292 + $0x120] sm:$0xff]
        %v514 = vld [vmem:[%s292 + $0x128] sm:$0xff]
        %v515 = vld [vmem:[%s292 + $0x130] sm:$0xff]
        %v516 = vld [vmem:[%s292 + $0x138] sm:$0xff]
        %v517 = vld [vmem:[%s292 + $0x140] sm:$0xff]
        %v518 = vld [vmem:[%s292 + $0x148] sm:$0xff]
        %v519 = vld [vmem:[%s292 + $0x150] sm:$0xff]
        %v520 = vld [vmem:[%s292 + $0x158] sm:$0xff]
        %v521 = vld [vmem:[%s292 + $0x160] sm:$0xff]
        %v522 = vld [vmem:[%s292 + $0x168] sm:$0xff]
        %v523 = vld [vmem:[%s292 + $0x170] sm:$0xff]
        %v524 = vld [vmem:[%s292 + $0x178] sm:$0xff]
        %v525 = vld [vmem:[%s292 + $0x180] sm:$0xff]
        %v526 = vld [vmem:[%s292 + $0x188] sm:$0xff]
        %v527 = vld [vmem:[%s292 + $0x190] sm:$0xff]
        %v528 = vld [vmem:[%s292 + $0x198] sm:$0xff]
        %v529 = vld [vmem:[%s292 + $0x1a0] sm:$0xff]
        %v530 = vld [vmem:[%s292 + $0x1a8] sm:$0xff]
        %v531 = vld [vmem:[%s292 + $0x1b0] sm:$0xff]
        %v532 = vld [vmem:[%s292 + $0x1b8] sm:$0xff]
        %v533 = vld [vmem:[%s292 + $0x1c0] sm:$0xff]
        %v534 = vld [vmem:[%s292 + $0x1c8] sm:$0xff]
        %v535 = vld [vmem:[%s292 + $0x1d0] sm:$0xff]
        %v536 = vld [vmem:[%s292 + $0x1d8] sm:$0xff]
        %v537 = vld [vmem:[%s292 + $0x1e0] sm:$0xff]
        %v538 = vld [vmem:[%s292 + $0x1e8] sm:$0xff]
        %v539 = vld [vmem:[%s292 + $0x1f0] sm:$0xff]
        %v540 = vld [vmem:[%s292 + $0x1f8] sm:$0xff]
        %v541 = vld [vmem:[%s292 + $0x200] sm:$0xff]
        %v542 = vld [vmem:[%s292 + $0x208] sm:$0xff]
        %v543 = vld [vmem:[%s292 + $0x210] sm:$0xff]
        %v544 = vld [vmem:[%s292 + $0x218] sm:$0xff]
        %v545 = vld [vmem:[%s292 + $0x220] sm:$0xff]
        %v546 = vld [vmem:[%s292 + $0x228] sm:$0xff]
        %v547 = vld [vmem:[%s292 + $0x230] sm:$0xff]
        %v548 = vld [vmem:[%s292 + $0x238] sm:$0xff]
        %v549 = vld [vmem:[%s292 + $0x240] sm:$0xff]
        %v550 = vld [vmem:[%s292 + $0x248] sm:$0xff]
        %v551 = vld [vmem:[%s292 + $0x250] sm:$0xff]
        %v552 = vld [vmem:[%s292 + $0x258] sm:$0xff]
        %v553 = vld [vmem:[%s292 + $0x260] sm:$0xff]
        %v554 = vld [vmem:[%s292 + $0x268] sm:$0xff]
        %v555 = vld [vmem:[%s292 + $0x270] sm:$0xff]
        %v556 = vld [vmem:[%s292 + $0x278] sm:$0xff]
        %v557 = vld [vmem:[%s292 + $0x280] sm:$0xff]
        %v558 = vld [vmem:[%s292 + $0x288] sm:$0xff]
        %v559 = vld [vmem:[%s292 + $0x290] sm:$0xff]
        %v560 = vld [vmem:[%s292 + $0x298] sm:$0xff]
        %v561 = vld [vmem:[%s292 + $0x2a0] sm:$0xff]
        %v562 = vld [vmem:[%s292 + $0x2a8] sm:$0xff]
        %v563 = vld [vmem:[%s292 + $0x2b0] sm:$0xff]
        %v564 = vld [vmem:[%s292 + $0x2b8] sm:$0xff]
        %v565 = vld [vmem:[%s292 + $0x2c0] sm:$0xff]
        %v566 = vld [vmem:[%s292 + $0x2c8] sm:$0xff]
        %v567 = vld [vmem:[%s292 + $0x2d0] sm:$0xff]
        %v568 = vld [vmem:[%s292 + $0x2d8] sm:$0xff]
        %v569 = vld [vmem:[%s292 + $0x2e0] sm:$0xff]
        %v570 = vld [vmem:[%s292 + $0x2e8] sm:$0xff]
        %v571 = vld [vmem:[%s292 + $0x2f0] sm:$0xff]
        %v572 = vld [vmem:[%s292 + $0x2f8] sm:$0xff]
        %v573 = vunpack.c.l.bf16 %v477
        %v574 = vunpack.c.h.bf16 %v477
        %v575 = vunpack.c.l.bf16 %v478
        %v576 = vunpack.c.h.bf16 %v478
        %v577 = vunpack.c.l.bf16 %v479
        %v578 = vunpack.c.h.bf16 %v479
        %v579 = vunpack.c.l.bf16 %v480
        %v580 = vunpack.c.h.bf16 %v480
        %v581 = vunpack.c.l.bf16 %v481
        %v582 = vunpack.c.h.bf16 %v481
        %v583 = vunpack.c.l.bf16 %v482
        %v584 = vunpack.c.h.bf16 %v482
        %v585 = vunpack.c.l.bf16 %v483
        %v586 = vunpack.c.h.bf16 %v483
        %v587 = vunpack.c.l.bf16 %v484
        %v588 = vunpack.c.h.bf16 %v484
        %v589 = vunpack.c.l.bf16 %v485
        %v590 = vunpack.c.h.bf16 %v485
        %v591 = vunpack.c.l.bf16 %v486
        %v592 = vunpack.c.h.bf16 %v486
        %v593 = vunpack.c.l.bf16 %v487
        %v594 = vunpack.c.h.bf16 %v487
        %v595 = vunpack.c.l.bf16 %v488
        %v596 = vunpack.c.h.bf16 %v488
        %v597 = vunpack.c.l.bf16 %v489
        %v598 = vunpack.c.h.bf16 %v489
        %v599 = vunpack.c.l.bf16 %v490
        %v600 = vunpack.c.h.bf16 %v490
        %v601 = vunpack.c.l.bf16 %v491
        %v602 = vunpack.c.h.bf16 %v491
        %v603 = vunpack.c.l.bf16 %v492
        %v604 = vunpack.c.h.bf16 %v492
        %v605 = vunpack.c.l.bf16 %v493
        %v606 = vunpack.c.h.bf16 %v493
        %v607 = vunpack.c.l.bf16 %v494
        %v608 = vunpack.c.h.bf16 %v494
        %v609 = vunpack.c.l.bf16 %v495
        %v610 = vunpack.c.h.bf16 %v495
        %v611 = vunpack.c.l.bf16 %v496
        %v612 = vunpack.c.h.bf16 %v496
        %v613 = vunpack.c.l.bf16 %v497
        %v614 = vunpack.c.h.bf16 %v497
        %v615 = vunpack.c.l.bf16 %v498
        %v616 = vunpack.c.h.bf16 %v498
        %v617 = vunpack.c.l.bf16 %v499
        %v618 = vunpack.c.h.bf16 %v499
        %v619 = vunpack.c.l.bf16 %v500
        %v620 = vunpack.c.h.bf16 %v500
        %v621 = vunpack.c.l.bf16 %v501
        %v622 = vunpack.c.h.bf16 %v501
        %v623 = vunpack.c.l.bf16 %v502
        %v624 = vunpack.c.h.bf16 %v502
        %v625 = vunpack.c.l.bf16 %v503
        %v626 = vunpack.c.h.bf16 %v503
        %v627 = vunpack.c.l.bf16 %v504
        %v628 = vunpack.c.h.bf16 %v504
        %v629 = vunpack.c.l.bf16 %v505
        %v630 = vunpack.c.h.bf16 %v505
        %v631 = vunpack.c.l.bf16 %v506
        %v632 = vunpack.c.h.bf16 %v506
        %v633 = vunpack.c.l.bf16 %v507
        %v634 = vunpack.c.h.bf16 %v507
        %v635 = vunpack.c.l.bf16 %v508
        %v636 = vunpack.c.h.bf16 %v508
        %v637 = vunpack.c.l.bf16 %v509
        %v638 = vunpack.c.h.bf16 %v509
        %v639 = vunpack.c.l.bf16 %v510
        %v640 = vunpack.c.h.bf16 %v510
        %v641 = vunpack.c.l.bf16 %v511
        %v642 = vunpack.c.h.bf16 %v511
        %v643 = vunpack.c.l.bf16 %v512
        %v644 = vunpack.c.h.bf16 %v512
        %v645 = vunpack.c.l.bf16 %v513
        %v646 = vunpack.c.h.bf16 %v513
        %v647 = vunpack.c.l.bf16 %v514
        %v648 = vunpack.c.h.bf16 %v514
        %v649 = vunpack.c.l.bf16 %v515
        %v650 = vunpack.c.h.bf16 %v515
        %v651 = vunpack.c.l.bf16 %v516
        %v652 = vunpack.c.h.bf16 %v516
        %v653 = vunpack.c.l.bf16 %v517
        %v654 = vunpack.c.h.bf16 %v517
        %v655 = vunpack.c.l.bf16 %v518
        %v656 = vunpack.c.h.bf16 %v518
        %v657 = vunpack.c.l.bf16 %v519
        %v658 = vunpack.c.h.bf16 %v519
        %v659 = vunpack.c.l.bf16 %v520
        %v660 = vunpack.c.h.bf16 %v520
        %v661 = vunpack.c.l.bf16 %v521
        %v662 = vunpack.c.h.bf16 %v521
        %v663 = vunpack.c.l.bf16 %v522
        %v664 = vunpack.c.h.bf16 %v522
        %v665 = vunpack.c.l.bf16 %v523
        %v666 = vunpack.c.h.bf16 %v523
        %v667 = vunpack.c.l.bf16 %v524
        %v668 = vunpack.c.h.bf16 %v524
        %v669 = vunpack.c.l.bf16 %v525
        %v670 = vunpack.c.h.bf16 %v525
        %v671 = vunpack.c.l.bf16 %v526
        %v672 = vunpack.c.h.bf16 %v526
        %v673 = vunpack.c.l.bf16 %v527
        %v674 = vunpack.c.h.bf16 %v527
        %v675 = vunpack.c.l.bf16 %v528
        %v676 = vunpack.c.h.bf16 %v528
        %v677 = vunpack.c.l.bf16 %v529
        %v678 = vunpack.c.h.bf16 %v529
        %v679 = vunpack.c.l.bf16 %v530
        %v680 = vunpack.c.h.bf16 %v530
        %v681 = vunpack.c.l.bf16 %v531
        %v682 = vunpack.c.h.bf16 %v531
        %v683 = vunpack.c.l.bf16 %v532
        %v684 = vunpack.c.h.bf16 %v532
        %v685 = vunpack.c.l.bf16 %v533
        %v686 = vunpack.c.h.bf16 %v533
        %v687 = vunpack.c.l.bf16 %v534
        %v688 = vunpack.c.h.bf16 %v534
        %v689 = vunpack.c.l.bf16 %v535
        %v690 = vunpack.c.h.bf16 %v535
        %v691 = vunpack.c.l.bf16 %v536
        %v692 = vunpack.c.h.bf16 %v536
        %v693 = vunpack.c.l.bf16 %v537
        %v694 = vunpack.c.h.bf16 %v537
        %v695 = vunpack.c.l.bf16 %v538
        %v696 = vunpack.c.h.bf16 %v538
        %v697 = vunpack.c.l.bf16 %v539
        %v698 = vunpack.c.h.bf16 %v539
        %v699 = vunpack.c.l.bf16 %v540
        %v700 = vunpack.c.h.bf16 %v540
        %v701 = vunpack.c.l.bf16 %v541
        %v702 = vunpack.c.h.bf16 %v541
        %v703 = vunpack.c.l.bf16 %v542
        %v704 = vunpack.c.h.bf16 %v542
        %v705 = vunpack.c.l.bf16 %v543
        %v706 = vunpack.c.h.bf16 %v543
        %v707 = vunpack.c.l.bf16 %v544
        %v708 = vunpack.c.h.bf16 %v544
        %v709 = vunpack.c.l.bf16 %v545
        %v710 = vunpack.c.h.bf16 %v545
        %v711 = vunpack.c.l.bf16 %v546
        %v712 = vunpack.c.h.bf16 %v546
        %v713 = vunpack.c.l.bf16 %v547
        %v714 = vunpack.c.h.bf16 %v547
        %v715 = vunpack.c.l.bf16 %v548
        %v716 = vunpack.c.h.bf16 %v548
        %v717 = vunpack.c.l.bf16 %v549
        %v718 = vunpack.c.h.bf16 %v549
        %v719 = vunpack.c.l.bf16 %v550
        %v720 = vunpack.c.h.bf16 %v550
        %v721 = vunpack.c.l.bf16 %v551
        %v722 = vunpack.c.h.bf16 %v551
        %v723 = vunpack.c.l.bf16 %v552
        %v724 = vunpack.c.h.bf16 %v552
        %v725 = vunpack.c.l.bf16 %v553
        %v726 = vunpack.c.h.bf16 %v553
        %v727 = vunpack.c.l.bf16 %v554
        %v728 = vunpack.c.h.bf16 %v554
        %v729 = vunpack.c.l.bf16 %v555
        %v730 = vunpack.c.h.bf16 %v555
        %v731 = vunpack.c.l.bf16 %v556
        %v732 = vunpack.c.h.bf16 %v556
        %v733 = vunpack.c.l.bf16 %v557
        %v734 = vunpack.c.h.bf16 %v557
        %v735 = vunpack.c.l.bf16 %v558
        %v736 = vunpack.c.h.bf16 %v558
        %v737 = vunpack.c.l.bf16 %v559
        %v738 = vunpack.c.h.bf16 %v559
        %v739 = vunpack.c.l.bf16 %v560
        %v740 = vunpack.c.h.bf16 %v560
        %v741 = vunpack.c.l.bf16 %v561
        %v742 = vunpack.c.h.bf16 %v561
        %v743 = vunpack.c.l.bf16 %v562
        %v744 = vunpack.c.h.bf16 %v562
        %v745 = vunpack.c.l.bf16 %v563
        %v746 = vunpack.c.h.bf16 %v563
        %v747 = vunpack.c.l.bf16 %v564
        %v748 = vunpack.c.h.bf16 %v564
        %v749 = vunpack.c.l.bf16 %v565
        %v750 = vunpack.c.h.bf16 %v565
        %v751 = vunpack.c.l.bf16 %v566
        %v752 = vunpack.c.h.bf16 %v566
        %v753 = vunpack.c.l.bf16 %v567
        %v754 = vunpack.c.h.bf16 %v567
        %v755 = vunpack.c.l.bf16 %v568
        %v756 = vunpack.c.h.bf16 %v568
        %v757 = vunpack.c.l.bf16 %v569
        %v758 = vunpack.c.h.bf16 %v569
        %v759 = vunpack.c.l.bf16 %v570
        %v760 = vunpack.c.h.bf16 %v570
        %v761 = vunpack.c.l.bf16 %v571
        %v762 = vunpack.c.h.bf16 %v571
        %v763 = vunpack.c.l.bf16 %v572
        %v764 = vunpack.c.h.bf16 %v572
        %v765 = vld [vmem:[%s301] sm:$0x3]
        %v767 = vlaneseq
        %v768 = vshrl.u32 %v767, 7
        %v769 = vsub.s32 0, %v768
        %v770 = vrot.slane %v765, %v769
        %v771 = vlaneseq
        %v772 = vshrl.u32 %v771, 7
        %v773 = vsub.s32 1, %v772
        %v774 = vrot.slane %v765, %v773
        %777 = vmatprep.subr.mxu0 %v574
        %778 = vmatpush1.msra.mxu0 %v573
        %779 = vmatprep.subr.mxu0 %v576
        %780 = vmatpush1.msra.mxu0 %v575
        %781 = vmatprep.subr.mxu0 %v578
        %782 = vmatpush1.msra.mxu0 %v577
        %783 = vmatprep.subr.mxu0 %v580
        %784 = vmatpush1.msra.mxu0 %v579
        %785 = vmatprep.subr.mxu0 %v582
        %786 = vmatpush1.msra.mxu0 %v581
        %787 = vmatprep.subr.mxu0 %v584
        %788 = vmatpush1.msra.mxu0 %v583
        %789 = vmatprep.subr.mxu0 %v586
        %790 = vmatpush1.msra.mxu0 %v585
        %791 = vmatprep.subr.mxu0 %v588
        %792 = vmatpush1.msra.mxu0 %v587
        %793 = vmatprep.subr.mxu0 %v590
        %794 = vmatpush1.msra.mxu0 %v589
        %795 = vmatprep.subr.mxu0 %v592
        %796 = vmatpush1.msra.mxu0 %v591
        %797 = vmatprep.subr.mxu0 %v594
        %798 = vmatpush1.msra.mxu0 %v593
        %799 = vmatprep.subr.mxu0 %v596
        %800 = vmatpush1.msra.mxu0 %v595
        %801 = vmatprep.subr.mxu0 %v598
        %802 = vmatpush1.msra.mxu0 %v597
        %803 = vmatprep.subr.mxu0 %v600
        %804 = vmatpush1.msra.mxu0 %v599
        %805 = vmatprep.subr.mxu0 %v602
        %806 = vmatpush1.msra.mxu0 %v601
        %807 = vmatprep.subr.mxu0 %v604
        %808 = vmatpush1.msra.mxu0 %v603
        %809 = vmatprep.subr.mxu0 %v606
        %810 = vmatpush1.msra.mxu0 %v605
        %811 = vmatprep.subr.mxu0 %v608
        %812 = vmatpush1.msra.mxu0 %v607
        %813 = vmatprep.subr.mxu0 %v610
        %814 = vmatpush1.msra.mxu0 %v609
        %815 = vmatprep.subr.mxu0 %v612
        %816 = vmatpush1.msra.mxu0 %v611
        %817 = vmatprep.subr.mxu0 %v614
        %818 = vmatpush1.msra.mxu0 %v613
        %819 = vmatprep.subr.mxu0 %v616
        %820 = vmatpush1.msra.mxu0 %v615
        %821 = vmatprep.subr.mxu0 %v618
        %822 = vmatpush1.msra.mxu0 %v617
        %823 = vmatprep.subr.mxu0 %v620
        %824 = vmatpush1.msra.mxu0 %v619
        %825 = vmatprep.subr.mxu0 %v622
        %826 = vmatpush1.msra.mxu0 %v621
        %827 = vmatprep.subr.mxu0 %v624
        %828 = vmatpush1.msra.mxu0 %v623
        %829 = vmatprep.subr.mxu0 %v626
        %830 = vmatpush1.msra.mxu0 %v625
        %831 = vmatprep.subr.mxu0 %v628
        %832 = vmatpush1.msra.mxu0 %v627
        %833 = vmatprep.subr.mxu0 %v630
        %834 = vmatpush1.msra.mxu0 %v629
        %835 = vmatprep.subr.mxu0 %v632
        %836 = vmatpush1.msra.mxu0 %v631
        %837 = vmatprep.subr.mxu0 %v634
        %838 = vmatpush1.msra.mxu0 %v633
        %839 = vmatprep.subr.mxu0 %v636
        %840 = vmatpush1.msra.mxu0 %v635
        %841 = vmatprep.mubr.f32.mxu0 %v408
        %842 = vmatmul.mubr.f32.gmra.mrb[0].mxu0 %v407
        %v843 = vpop.f32.mrb[0].mxu0
        %v844 = vadd.f32 %v770, %v843
        %v845 = vpop.f32.mrb[0].mxu0
        %v846 = vadd.f32 %v774, %v845
        %847 = vmatprep.mubr.f32.mxu0 %v410
        %848 = vmatmul.mubr.f32.gmra.mrb[0].mxu0 %v409
        %v849 = vpop.f32.mrb[0].mxu0
        %v850 = vadd.f32 %v770, %v849
        %v851 = vpop.f32.mrb[0].mxu0
        %v852 = vadd.f32 %v774, %v851
        %853 = vdwg.mxu0
        %854 = vmatprep.subr.mxu0 %v638
        %855 = vmatpush1.msra.mxu0 %v637
        %856 = vmatprep.subr.mxu0 %v640
        %857 = vmatpush1.msra.mxu0 %v639
        %858 = vmatprep.subr.mxu0 %v642
        %859 = vmatpush1.msra.mxu0 %v641
        %860 = vmatprep.subr.mxu0 %v644
        %861 = vmatpush1.msra.mxu0 %v643
        %862 = vmatprep.subr.mxu0 %v646
        %863 = vmatpush1.msra.mxu0 %v645
        %864 = vmatprep.subr.mxu0 %v648
        %865 = vmatpush1.msra.mxu0 %v647
        %866 = vmatprep.subr.mxu0 %v650
        %867 = vmatpush1.msra.mxu0 %v649
        %868 = vmatprep.subr.mxu0 %v652
        %869 = vmatpush1.msra.mxu0 %v651
        %870 = vmatprep.subr.mxu0 %v654
        %871 = vmatpush1.msra.mxu0 %v653
        %872 = vmatprep.subr.mxu0 %v656
        %873 = vmatpush1.msra.mxu0 %v655
        %874 = vmatprep.subr.mxu0 %v658
        %875 = vmatpush1.msra.mxu0 %v657
        %876 = vmatprep.subr.mxu0 %v660
        %877 = vmatpush1.msra.mxu0 %v659
        %878 = vmatprep.subr.mxu0 %v662
        %879 = vmatpush1.msra.mxu0 %v661
        %880 = vmatprep.subr.mxu0 %v664
        %881 = vmatpush1.msra.mxu0 %v663
        %882 = vmatprep.subr.mxu0 %v666
        %883 = vmatpush1.msra.mxu0 %v665
        %884 = vmatprep.subr.mxu0 %v668
        %885 = vmatpush1.msra.mxu0 %v667
        %886 = vmatprep.subr.mxu0 %v670
        %887 = vmatpush1.msra.mxu0 %v669
        %888 = vmatprep.subr.mxu0 %v672
        %889 = vmatpush1.msra.mxu0 %v671
        %890 = vmatprep.subr.mxu0 %v674
        %891 = vmatpush1.msra.mxu0 %v673
        %892 = vmatprep.subr.mxu0 %v676
        %893 = vmatpush1.msra.mxu0 %v675
        %894 = vmatprep.subr.mxu0 %v678
        %895 = vmatpush1.msra.mxu0 %v677
        %896 = vmatprep.subr.mxu0 %v680
        %897 = vmatpush1.msra.mxu0 %v679
        %898 = vmatprep.subr.mxu0 %v682
        %899 = vmatpush1.msra.mxu0 %v681
        %900 = vmatprep.subr.mxu0 %v684
        %901 = vmatpush1.msra.mxu0 %v683
        %902 = vmatprep.subr.mxu0 %v686
        %903 = vmatpush1.msra.mxu0 %v685
        %904 = vmatprep.subr.mxu0 %v688
        %905 = vmatpush1.msra.mxu0 %v687
        %906 = vmatprep.subr.mxu0 %v690
        %907 = vmatpush1.msra.mxu0 %v689
        %908 = vmatprep.subr.mxu0 %v692
        %909 = vmatpush1.msra.mxu0 %v691
        %910 = vmatprep.subr.mxu0 %v694
        %911 = vmatpush1.msra.mxu0 %v693
        %912 = vmatprep.subr.mxu0 %v696
        %913 = vmatpush1.msra.mxu0 %v695
        %914 = vmatprep.subr.mxu0 %v698
        %915 = vmatpush1.msra.mxu0 %v697
        %916 = vmatprep.subr.mxu0 %v700
        %917 = vmatpush1.msra.mxu0 %v699
        %918 = vmatprep.mubr.f32.mxu0 %v433
        %919 = vmatmul.mubr.f32.gmra.mrb[0].mxu0 %v430
        %v920 = vpop.f32.mrb[0].mxu0
        %v921 = vadd.f32 %v844, %v920
        %v922 = vpop.f32.mrb[0].mxu0
        %v923 = vadd.f32 %v846, %v922
        %924 = vmatprep.mubr.f32.mxu0 %v439
        %925 = vmatmul.mubr.f32.gmra.mrb[0].mxu0 %v436
        %v926 = vpop.f32.mrb[0].mxu0
        %v927 = vadd.f32 %v850, %v926
        %v928 = vpop.f32.mrb[0].mxu0
        %v929 = vadd.f32 %v852, %v928
        %930 = vdwg.mxu0
        %931 = vmatprep.subr.mxu0 %v702
        %932 = vmatpush1.msra.mxu0 %v701
        %933 = vmatprep.subr.mxu0 %v704
        %934 = vmatpush1.msra.mxu0 %v703
        %935 = vmatprep.subr.mxu0 %v706
        %936 = vmatpush1.msra.mxu0 %v705
        %937 = vmatprep.subr.mxu0 %v708
        %938 = vmatpush1.msra.mxu0 %v707
        %939 = vmatprep.subr.mxu0 %v710
        %940 = vmatpush1.msra.mxu0 %v709
        %941 = vmatprep.subr.mxu0 %v712
        %942 = vmatpush1.msra.mxu0 %v711
        %943 = vmatprep.subr.mxu0 %v714
        %944 = vmatpush1.msra.mxu0 %v713
        %945 = vmatprep.subr.mxu0 %v716
        %946 = vmatpush1.msra.mxu0 %v715
        %947 = vmatprep.subr.mxu0 %v718
        %948 = vmatpush1.msra.mxu0 %v717
        %949 = vmatprep.subr.mxu0 %v720
        %950 = vmatpush1.msra.mxu0 %v719
        %951 = vmatprep.subr.mxu0 %v722
        %952 = vmatpush1.msra.mxu0 %v721
        %953 = vmatprep.subr.mxu0 %v724
        %954 = vmatpush1.msra.mxu0 %v723
        %955 = vmatprep.subr.mxu0 %v726
        %956 = vmatpush1.msra.mxu0 %v725
        %957 = vmatprep.subr.mxu0 %v728
        %958 = vmatpush1.msra.mxu0 %v727
        %959 = vmatprep.subr.mxu0 %v730
        %960 = vmatpush1.msra.mxu0 %v729
        %961 = vmatprep.subr.mxu0 %v732
        %962 = vmatpush1.msra.mxu0 %v731
        %963 = vmatprep.subr.mxu0 %v734
        %964 = vmatpush1.msra.mxu0 %v733
        %965 = vmatprep.subr.mxu0 %v736
        %966 = vmatpush1.msra.mxu0 %v735
        %967 = vmatprep.subr.mxu0 %v738
        %968 = vmatpush1.msra.mxu0 %v737
        %969 = vmatprep.subr.mxu0 %v740
        %970 = vmatpush1.msra.mxu0 %v739
        %971 = vmatprep.subr.mxu0 %v742
        %972 = vmatpush1.msra.mxu0 %v741
        %973 = vmatprep.subr.mxu0 %v744
        %974 = vmatpush1.msra.mxu0 %v743
        %975 = vmatprep.subr.mxu0 %v746
        %976 = vmatpush1.msra.mxu0 %v745
        %977 = vmatprep.subr.mxu0 %v748
        %978 = vmatpush1.msra.mxu0 %v747
        %979 = vmatprep.subr.mxu0 %v750
        %980 = vmatpush1.msra.mxu0 %v749
        %981 = vmatprep.subr.mxu0 %v752
        %982 = vmatpush1.msra.mxu0 %v751
        %983 = vmatprep.subr.mxu0 %v754
        %984 = vmatpush1.msra.mxu0 %v753
        %985 = vmatprep.subr.mxu0 %v756
        %986 = vmatpush1.msra.mxu0 %v755
        %987 = vmatprep.subr.mxu0 %v758
        %988 = vmatpush1.msra.mxu0 %v757
        %989 = vmatprep.subr.mxu0 %v760
        %990 = vmatpush1.msra.mxu0 %v759
        %991 = vmatprep.subr.mxu0 %v762
        %992 = vmatpush1.msra.mxu0 %v761
        %993 = vmatprep.subr.mxu0 %v764
        %994 = vmatpush1.msra.mxu0 %v763
        %995 = vmatprep.mubr.f32.mxu0 %v466
        %996 = vmatmul.mubr.f32.gmra.mrb[0].mxu0 %v463
        %v997 = vpop.f32.mrb[0].mxu0
        %v998 = vadd.f32 %v921, %v997
        %v999 = vpop.f32.mrb[0].mxu0
        %v1000 = vadd.f32 %v923, %v999
        %1001 = vmatprep.mubr.f32.mxu0 %v472
        %1002 = vmatmul.mubr.f32.gmra.mrb[0].mxu0 %v469
        %v1003 = vpop.f32.mrb[0].mxu0
        %v1004 = vadd.f32 %v927, %v1003
        %v1005 = vpop.f32.mrb[0].mxu0
        %v1006 = vadd.f32 %v929, %v1005
        %1007 = vdwg.mxu0
        %vm1008 = vcmp.ge.f32.partialorder %v998, 0.0
        %vm1009 = vcmp.ge.f32.partialorder %v1000, 0.0
        %vm1010 = vcmp.ge.f32.partialorder %v1004, 0.0
        %vm1011 = vcmp.ge.f32.partialorder %v1006, 0.0
        %v1012 = vmul.f32 %v998, 0.2
        %v1013 = vmul.f32 %v1000, 0.2
        %v1014 = vmul.f32 %v1004, 0.2
        %v1015 = vmul.f32 %v1006, 0.2
        %v1016 = vsel %vm1008, %v998, %v1012
        %v1017 = vsel %vm1009, %v1000, %v1013
        %v1018 = vsel %vm1010, %v1004, %v1014
        %v1019 = vsel %vm1011, %v1006, %v1015
        %v1024 = vrot.slane %v1016, 7
        %v1025 = vrot.slane %v1017, 7
        %v1026 = vrot.slane %v1018, 7
        %v1027 = vrot.slane %v1019, 7
        %1032 = vst [vmem:[#allocation2] sm:$0xfe] %v1024
        %1033 = vst [vmem:[#allocation2 + $0x8] sm:$0xfe] %v1025
        %1034 = vst [vmem:[#allocation2 + $0x10] sm:$0x1] %v1024
        %1035 = vst [vmem:[#allocation2 + $0x18] sm:$0x1] %v1025
        %1036 = vst [vmem:[#allocation2 + $0x20] sm:$0xfe] %v1026
        %1037 = vst [vmem:[#allocation2 + $0x28] sm:$0xfe] %v1027
        %1038 = vst [vmem:[#allocation2 + $0x30] sm:$0x1] %v1026
        %1039 = vst [vmem:[#allocation2 + $0x38] sm:$0x1] %v1027
        %v1040 = vld [vmem:[#allocation2] sm:$0xff]
        %v1041 = vld [vmem:[#allocation2 + $0x8] sm:$0xff]
        %v1042 = vld [vmem:[#allocation2 + $0x20] sm:$0xff]
        %v1043 = vld [vmem:[#allocation2 + $0x28] sm:$0xff]
        %v1044 = vld [vmem:[#allocation2] sm:$0xfe]
        %v1045 = vld [vmem:[#allocation2 + $0x8] sm:$0xfe]
        %v1046 = vld [vmem:[#allocation2 + $0x10] sm:$0x1]
        %v1047 = vld [vmem:[#allocation2 + $0x18] sm:$0x1]
        %v1048 = vld [vmem:[#allocation2 + $0x20] sm:$0xfe]
        %v1049 = vld [vmem:[#allocation2 + $0x28] sm:$0xfe]
        %v1050 = vld [vmem:[#allocation2 + $0x30] sm:$0x1]
        %v1051 = vld [vmem:[#allocation2 + $0x38] sm:$0x1]
        %v1060 = vrot.slane %v1044, 1
        %v1061 = vrot.slane %v1046, 1
        %v1062 = vsel %vm427, %v1060, %v1061
        %v1063 = vrot.slane %v1045, 1
        %v1064 = vrot.slane %v1047, 1
        %v1065 = vsel %vm427, %v1063, %v1064
        %v1066 = vrot.slane %v1048, 1
        %v1067 = vrot.slane %v1050, 1
        %v1068 = vsel %vm427, %v1066, %v1067
        %v1069 = vrot.slane %v1049, 1
        %v1070 = vrot.slane %v1051, 1
        %v1071 = vsel %vm427, %v1069, %v1070
        %v1076 = vld [vmem:[#allocation2] sm:$0xfc]
        %v1077 = vld [vmem:[#allocation2 + $0x8] sm:$0xfc]
        %v1078 = vld [vmem:[#allocation2 + $0x10] sm:$0x3]
        %v1079 = vld [vmem:[#allocation2 + $0x18] sm:$0x3]
        %v1080 = vld [vmem:[#allocation2 + $0x20] sm:$0xfc]
        %v1081 = vld [vmem:[#allocation2 + $0x28] sm:$0xfc]
        %v1082 = vld [vmem:[#allocation2 + $0x30] sm:$0x3]
        %v1083 = vld [vmem:[#allocation2 + $0x38] sm:$0x3]
        %v1092 = vrot.slane %v1076, 2
        %v1093 = vrot.slane %v1078, 2
        %v1094 = vsel %vm460, %v1092, %v1093
        %v1095 = vrot.slane %v1077, 2
        %v1096 = vrot.slane %v1079, 2
        %v1097 = vsel %vm460, %v1095, %v1096
        %v1098 = vrot.slane %v1080, 2
        %v1099 = vrot.slane %v1082, 2
        %v1100 = vsel %vm460, %v1098, %v1099
        %v1101 = vrot.slane %v1081, 2
        %v1102 = vrot.slane %v1083, 2
        %v1103 = vsel %vm460, %v1101, %v1102
        %v1108 = vld [vmem:[%s310] sm:$0xff]
        %v1109 = vld [vmem:[%s310 + $0x8] sm:$0xff]
        %v1110 = vld [vmem:[%s310 + $0x10] sm:$0xff]
        %v1111 = vld [vmem:[%s310 + $0x18] sm:$0xff]
        %v1112 = vld [vmem:[%s310 + $0x20] sm:$0xff]
        %v1113 = vld [vmem:[%s310 + $0x28] sm:$0xff]
        %v1114 = vld [vmem:[%s310 + $0x30] sm:$0xff]
        %v1115 = vld [vmem:[%s310 + $0x38] sm:$0xff]
        %v1116 = vld [vmem:[%s310 + $0x40] sm:$0xff]
        %v1117 = vld [vmem:[%s310 + $0x48] sm:$0xff]
        %v1118 = vld [vmem:[%s310 + $0x50] sm:$0xff]
        %v1119 = vld [vmem:[%s310 + $0x58] sm:$0xff]
        %v1120 = vld [vmem:[%s310 + $0x60] sm:$0xff]
        %v1121 = vld [vmem:[%s310 + $0x68] sm:$0xff]
        %v1122 = vld [vmem:[%s310 + $0x70] sm:$0xff]
        %v1123 = vld [vmem:[%s310 + $0x78] sm:$0xff]
        %v1124 = vld [vmem:[%s310 + $0x80] sm:$0xff]
        %v1125 = vld [vmem:[%s310 + $0x88] sm:$0xff]
        %v1126 = vld [vmem:[%s310 + $0x90] sm:$0xff]
        %v1127 = vld [vmem:[%s310 + $0x98] sm:$0xff]
        %v1128 = vld [vmem:[%s310 + $0xa0] sm:$0xff]
        %v1129 = vld [vmem:[%s310 + $0xa8] sm:$0xff]
        %v1130 = vld [vmem:[%s310 + $0xb0] sm:$0xff]
        %v1131 = vld [vmem:[%s310 + $0xb8] sm:$0xff]
        %v1132 = vld [vmem:[%s310 + $0xc0] sm:$0xff]
        %v1133 = vld [vmem:[%s310 + $0xc8] sm:$0xff]
        %v1134 = vld [vmem:[%s310 + $0xd0] sm:$0xff]
        %v1135 = vld [vmem:[%s310 + $0xd8] sm:$0xff]
        %v1136 = vld [vmem:[%s310 + $0xe0] sm:$0xff]
        %v1137 = vld [vmem:[%s310 + $0xe8] sm:$0xff]
        %v1138 = vld [vmem:[%s310 + $0xf0] sm:$0xff]
        %v1139 = vld [vmem:[%s310 + $0xf8] sm:$0xff]
        %v1140 = vld [vmem:[%s310 + $0x100] sm:$0xff]
        %v1141 = vld [vmem:[%s310 + $0x108] sm:$0xff]
        %v1142 = vld [vmem:[%s310 + $0x110] sm:$0xff]
        %v1143 = vld [vmem:[%s310 + $0x118] sm:$0xff]
        %v1144 = vld [vmem:[%s310 + $0x120] sm:$0xff]
        %v1145 = vld [vmem:[%s310 + $0x128] sm:$0xff]
        %v1146 = vld [vmem:[%s310 + $0x130] sm:$0xff]
        %v1147 = vld [vmem:[%s310 + $0x138] sm:$0xff]
        %v1148 = vld [vmem:[%s310 + $0x140] sm:$0xff]
        %v1149 = vld [vmem:[%s310 + $0x148] sm:$0xff]
        %v1150 = vld [vmem:[%s310 + $0x150] sm:$0xff]
        %v1151 = vld [vmem:[%s310 + $0x158] sm:$0xff]
        %v1152 = vld [vmem:[%s310 + $0x160] sm:$0xff]
        %v1153 = vld [vmem:[%s310 + $0x168] sm:$0xff]
        %v1154 = vld [vmem:[%s310 + $0x170] sm:$0xff]
        %v1155 = vld [vmem:[%s310 + $0x178] sm:$0xff]
        %v1156 = vld [vmem:[%s310 + $0x180] sm:$0xff]
        %v1157 = vld [vmem:[%s310 + $0x188] sm:$0xff]
        %v1158 = vld [vmem:[%s310 + $0x190] sm:$0xff]
        %v1159 = vld [vmem:[%s310 + $0x198] sm:$0xff]
        %v1160 = vld [vmem:[%s310 + $0x1a0] sm:$0xff]
        %v1161 = vld [vmem:[%s310 + $0x1a8] sm:$0xff]
        %v1162 = vld [vmem:[%s310 + $0x1b0] sm:$0xff]
        %v1163 = vld [vmem:[%s310 + $0x1b8] sm:$0xff]
        %v1164 = vld [vmem:[%s310 + $0x1c0] sm:$0xff]
        %v1165 = vld [vmem:[%s310 + $0x1c8] sm:$0xff]
        %v1166 = vld [vmem:[%s310 + $0x1d0] sm:$0xff]
        %v1167 = vld [vmem:[%s310 + $0x1d8] sm:$0xff]
        %v1168 = vld [vmem:[%s310 + $0x1e0] sm:$0xff]
        %v1169 = vld [vmem:[%s310 + $0x1e8] sm:$0xff]
        %v1170 = vld [vmem:[%s310 + $0x1f0] sm:$0xff]
        %v1171 = vld [vmem:[%s310 + $0x1f8] sm:$0xff]
        %v1172 = vld [vmem:[%s310 + $0x200] sm:$0xff]
        %v1173 = vld [vmem:[%s310 + $0x208] sm:$0xff]
        %v1174 = vld [vmem:[%s310 + $0x210] sm:$0xff]
        %v1175 = vld [vmem:[%s310 + $0x218] sm:$0xff]
        %v1176 = vld [vmem:[%s310 + $0x220] sm:$0xff]
        %v1177 = vld [vmem:[%s310 + $0x228] sm:$0xff]
        %v1178 = vld [vmem:[%s310 + $0x230] sm:$0xff]
        %v1179 = vld [vmem:[%s310 + $0x238] sm:$0xff]
        %v1180 = vld [vmem:[%s310 + $0x240] sm:$0xff]
        %v1181 = vld [vmem:[%s310 + $0x248] sm:$0xff]
        %v1182 = vld [vmem:[%s310 + $0x250] sm:$0xff]
        %v1183 = vld [vmem:[%s310 + $0x258] sm:$0xff]
        %v1184 = vld [vmem:[%s310 + $0x260] sm:$0xff]
        %v1185 = vld [vmem:[%s310 + $0x268] sm:$0xff]
        %v1186 = vld [vmem:[%s310 + $0x270] sm:$0xff]
        %v1187 = vld [vmem:[%s310 + $0x278] sm:$0xff]
        %v1188 = vld [vmem:[%s310 + $0x280] sm:$0xff]
        %v1189 = vld [vmem:[%s310 + $0x288] sm:$0xff]
        %v1190 = vld [vmem:[%s310 + $0x290] sm:$0xff]
        %v1191 = vld [vmem:[%s310 + $0x298] sm:$0xff]
        %v1192 = vld [vmem:[%s310 + $0x2a0] sm:$0xff]
        %v1193 = vld [vmem:[%s310 + $0x2a8] sm:$0xff]
        %v1194 = vld [vmem:[%s310 + $0x2b0] sm:$0xff]
        %v1195 = vld [vmem:[%s310 + $0x2b8] sm:$0xff]
        %v1196 = vld [vmem:[%s310 + $0x2c0] sm:$0xff]
        %v1197 = vld [vmem:[%s310 + $0x2c8] sm:$0xff]
        %v1198 = vld [vmem:[%s310 + $0x2d0] sm:$0xff]
        %v1199 = vld [vmem:[%s310 + $0x2d8] sm:$0xff]
        %v1200 = vld [vmem:[%s310 + $0x2e0] sm:$0xff]
        %v1201 = vld [vmem:[%s310 + $0x2e8] sm:$0xff]
        %v1202 = vld [vmem:[%s310 + $0x2f0] sm:$0xff]
        %v1203 = vld [vmem:[%s310 + $0x2f8] sm:$0xff]
        %v1204 = vunpack.c.l.bf16 %v1108
        %v1205 = vunpack.c.h.bf16 %v1108
        %v1206 = vunpack.c.l.bf16 %v1109
        %v1207 = vunpack.c.h.bf16 %v1109
        %v1208 = vunpack.c.l.bf16 %v1110
        %v1209 = vunpack.c.h.bf16 %v1110
        %v1210 = vunpack.c.l.bf16 %v1111
        %v1211 = vunpack.c.h.bf16 %v1111
        %v1212 = vunpack.c.l.bf16 %v1112
        %v1213 = vunpack.c.h.bf16 %v1112
        %v1214 = vunpack.c.l.bf16 %v1113
        %v1215 = vunpack.c.h.bf16 %v1113
        %v1216 = vunpack.c.l.bf16 %v1114
        %v1217 = vunpack.c.h.bf16 %v1114
        %v1218 = vunpack.c.l.bf16 %v1115
        %v1219 = vunpack.c.h.bf16 %v1115
        %v1220 = vunpack.c.l.bf16 %v1116
        %v1221 = vunpack.c.h.bf16 %v1116
        %v1222 = vunpack.c.l.bf16 %v1117
        %v1223 = vunpack.c.h.bf16 %v1117
        %v1224 = vunpack.c.l.bf16 %v1118
        %v1225 = vunpack.c.h.bf16 %v1118
        %v1226 = vunpack.c.l.bf16 %v1119
        %v1227 = vunpack.c.h.bf16 %v1119
        %v1228 = vunpack.c.l.bf16 %v1120
        %v1229 = vunpack.c.h.bf16 %v1120
        %v1230 = vunpack.c.l.bf16 %v1121
        %v1231 = vunpack.c.h.bf16 %v1121
        %v1232 = vunpack.c.l.bf16 %v1122
        %v1233 = vunpack.c.h.bf16 %v1122
        %v1234 = vunpack.c.l.bf16 %v1123
        %v1235 = vunpack.c.h.bf16 %v1123
        %v1236 = vunpack.c.l.bf16 %v1124
        %v1237 = vunpack.c.h.bf16 %v1124
        %v1238 = vunpack.c.l.bf16 %v1125
        %v1239 = vunpack.c.h.bf16 %v1125
        %v1240 = vunpack.c.l.bf16 %v1126
        %v1241 = vunpack.c.h.bf16 %v1126
        %v1242 = vunpack.c.l.bf16 %v1127
        %v1243 = vunpack.c.h.bf16 %v1127
        %v1244 = vunpack.c.l.bf16 %v1128
        %v1245 = vunpack.c.h.bf16 %v1128
        %v1246 = vunpack.c.l.bf16 %v1129
        %v1247 = vunpack.c.h.bf16 %v1129
        %v1248 = vunpack.c.l.bf16 %v1130
        %v1249 = vunpack.c.h.bf16 %v1130
        %v1250 = vunpack.c.l.bf16 %v1131
        %v1251 = vunpack.c.h.bf16 %v1131
        %v1252 = vunpack.c.l.bf16 %v1132
        %v1253 = vunpack.c.h.bf16 %v1132
        %v1254 = vunpack.c.l.bf16 %v1133
        %v1255 = vunpack.c.h.bf16 %v1133
        %v1256 = vunpack.c.l.bf16 %v1134
        %v1257 = vunpack.c.h.bf16 %v1134
        %v1258 = vunpack.c.l.bf16 %v1135
        %v1259 = vunpack.c.h.bf16 %v1135
        %v1260 = vunpack.c.l.bf16 %v1136
        %v1261 = vunpack.c.h.bf16 %v1136
        %v1262 = vunpack.c.l.bf16 %v1137
        %v1263 = vunpack.c.h.bf16 %v1137
        %v1264 = vunpack.c.l.bf16 %v1138
        %v1265 = vunpack.c.h.bf16 %v1138
        %v1266 = vunpack.c.l.bf16 %v1139
        %v1267 = vunpack.c.h.bf16 %v1139
        %v1268 = vunpack.c.l.bf16 %v1140
        %v1269 = vunpack.c.h.bf16 %v1140
        %v1270 = vunpack.c.l.bf16 %v1141
        %v1271 = vunpack.c.h.bf16 %v1141
        %v1272 = vunpack.c.l.bf16 %v1142
        %v1273 = vunpack.c.h.bf16 %v1142
        %v1274 = vunpack.c.l.bf16 %v1143
        %v1275 = vunpack.c.h.bf16 %v1143
        %v1276 = vunpack.c.l.bf16 %v1144
        %v1277 = vunpack.c.h.bf16 %v1144
        %v1278 = vunpack.c.l.bf16 %v1145
        %v1279 = vunpack.c.h.bf16 %v1145
        %v1280 = vunpack.c.l.bf16 %v1146
        %v1281 = vunpack.c.h.bf16 %v1146
        %v1282 = vunpack.c.l.bf16 %v1147
        %v1283 = vunpack.c.h.bf16 %v1147
        %v1284 = vunpack.c.l.bf16 %v1148
        %v1285 = vunpack.c.h.bf16 %v1148
        %v1286 = vunpack.c.l.bf16 %v1149
        %v1287 = vunpack.c.h.bf16 %v1149
        %v1288 = vunpack.c.l.bf16 %v1150
        %v1289 = vunpack.c.h.bf16 %v1150
        %v1290 = vunpack.c.l.bf16 %v1151
        %v1291 = vunpack.c.h.bf16 %v1151
        %v1292 = vunpack.c.l.bf16 %v1152
        %v1293 = vunpack.c.h.bf16 %v1152
        %v1294 = vunpack.c.l.bf16 %v1153
        %v1295 = vunpack.c.h.bf16 %v1153
        %v1296 = vunpack.c.l.bf16 %v1154
        %v1297 = vunpack.c.h.bf16 %v1154
        %v1298 = vunpack.c.l.bf16 %v1155
        %v1299 = vunpack.c.h.bf16 %v1155
        %v1300 = vunpack.c.l.bf16 %v1156
        %v1301 = vunpack.c.h.bf16 %v1156
        %v1302 = vunpack.c.l.bf16 %v1157
        %v1303 = vunpack.c.h.bf16 %v1157
        %v1304 = vunpack.c.l.bf16 %v1158
        %v1305 = vunpack.c.h.bf16 %v1158
        %v1306 = vunpack.c.l.bf16 %v1159
        %v1307 = vunpack.c.h.bf16 %v1159
        %v1308 = vunpack.c.l.bf16 %v1160
        %v1309 = vunpack.c.h.bf16 %v1160
        %v1310 = vunpack.c.l.bf16 %v1161
        %v1311 = vunpack.c.h.bf16 %v1161
        %v1312 = vunpack.c.l.bf16 %v1162
        %v1313 = vunpack.c.h.bf16 %v1162
        %v1314 = vunpack.c.l.bf16 %v1163
        %v1315 = vunpack.c.h.bf16 %v1163
        %v1316 = vunpack.c.l.bf16 %v1164
        %v1317 = vunpack.c.h.bf16 %v1164
        %v1318 = vunpack.c.l.bf16 %v1165
        %v1319 = vunpack.c.h.bf16 %v1165
        %v1320 = vunpack.c.l.bf16 %v1166
        %v1321 = vunpack.c.h.bf16 %v1166
        %v1322 = vunpack.c.l.bf16 %v1167
        %v1323 = vunpack.c.h.bf16 %v1167
        %v1324 = vunpack.c.l.bf16 %v1168
        %v1325 = vunpack.c.h.bf16 %v1168
        %v1326 = vunpack.c.l.bf16 %v1169
        %v1327 = vunpack.c.h.bf16 %v1169
        %v1328 = vunpack.c.l.bf16 %v1170
        %v1329 = vunpack.c.h.bf16 %v1170
        %v1330 = vunpack.c.l.bf16 %v1171
        %v1331 = vunpack.c.h.bf16 %v1171
        %v1332 = vunpack.c.l.bf16 %v1172
        %v1333 = vunpack.c.h.bf16 %v1172
        %v1334 = vunpack.c.l.bf16 %v1173
        %v1335 = vunpack.c.h.bf16 %v1173
        %v1336 = vunpack.c.l.bf16 %v1174
        %v1337 = vunpack.c.h.bf16 %v1174
        %v1338 = vunpack.c.l.bf16 %v1175
        %v1339 = vunpack.c.h.bf16 %v1175
        %v1340 = vunpack.c.l.bf16 %v1176
        %v1341 = vunpack.c.h.bf16 %v1176
        %v1342 = vunpack.c.l.bf16 %v1177
        %v1343 = vunpack.c.h.bf16 %v1177
        %v1344 = vunpack.c.l.bf16 %v1178
        %v1345 = vunpack.c.h.bf16 %v1178
        %v1346 = vunpack.c.l.bf16 %v1179
        %v1347 = vunpack.c.h.bf16 %v1179
        %v1348 = vunpack.c.l.bf16 %v1180
        %v1349 = vunpack.c.h.bf16 %v1180
        %v1350 = vunpack.c.l.bf16 %v1181
        %v1351 = vunpack.c.h.bf16 %v1181
        %v1352 = vunpack.c.l.bf16 %v1182
        %v1353 = vunpack.c.h.bf16 %v1182
        %v1354 = vunpack.c.l.bf16 %v1183
        %v1355 = vunpack.c.h.bf16 %v1183
        %v1356 = vunpack.c.l.bf16 %v1184
        %v1357 = vunpack.c.h.bf16 %v1184
        %v1358 = vunpack.c.l.bf16 %v1185
        %v1359 = vunpack.c.h.bf16 %v1185
        %v1360 = vunpack.c.l.bf16 %v1186
        %v1361 = vunpack.c.h.bf16 %v1186
        %v1362 = vunpack.c.l.bf16 %v1187
        %v1363 = vunpack.c.h.bf16 %v1187
        %v1364 = vunpack.c.l.bf16 %v1188
        %v1365 = vunpack.c.h.bf16 %v1188
        %v1366 = vunpack.c.l.bf16 %v1189
        %v1367 = vunpack.c.h.bf16 %v1189
        %v1368 = vunpack.c.l.bf16 %v1190
        %v1369 = vunpack.c.h.bf16 %v1190
        %v1370 = vunpack.c.l.bf16 %v1191
        %v1371 = vunpack.c.h.bf16 %v1191
        %v1372 = vunpack.c.l.bf16 %v1192
        %v1373 = vunpack.c.h.bf16 %v1192
        %v1374 = vunpack.c.l.bf16 %v1193
        %v1375 = vunpack.c.h.bf16 %v1193
        %v1376 = vunpack.c.l.bf16 %v1194
        %v1377 = vunpack.c.h.bf16 %v1194
        %v1378 = vunpack.c.l.bf16 %v1195
        %v1379 = vunpack.c.h.bf16 %v1195
        %v1380 = vunpack.c.l.bf16 %v1196
        %v1381 = vunpack.c.h.bf16 %v1196
        %v1382 = vunpack.c.l.bf16 %v1197
        %v1383 = vunpack.c.h.bf16 %v1197
        %v1384 = vunpack.c.l.bf16 %v1198
        %v1385 = vunpack.c.h.bf16 %v1198
        %v1386 = vunpack.c.l.bf16 %v1199
        %v1387 = vunpack.c.h.bf16 %v1199
        %v1388 = vunpack.c.l.bf16 %v1200
        %v1389 = vunpack.c.h.bf16 %v1200
        %v1390 = vunpack.c.l.bf16 %v1201
        %v1391 = vunpack.c.h.bf16 %v1201
        %v1392 = vunpack.c.l.bf16 %v1202
        %v1393 = vunpack.c.h.bf16 %v1202
        %v1394 = vunpack.c.l.bf16 %v1203
        %v1395 = vunpack.c.h.bf16 %v1203
        %v1396 = vld [vmem:[%s319] sm:$0x3]
        %v1398 = vlaneseq
        %v1399 = vshrl.u32 %v1398, 7
        %v1400 = vsub.s32 0, %v1399
        %v1401 = vrot.slane %v1396, %v1400
        %v1402 = vlaneseq
        %v1403 = vshrl.u32 %v1402, 7
        %v1404 = vsub.s32 1, %v1403
        %v1405 = vrot.slane %v1396, %v1404
        %1408 = vmatprep.subr.mxu0 %v1205
        %1409 = vmatpush1.msra.mxu0 %v1204
        %1410 = vmatprep.subr.mxu0 %v1207
        %1411 = vmatpush1.msra.mxu0 %v1206
        %1412 = vmatprep.subr.mxu0 %v1209
        %1413 = vmatpush1.msra.mxu0 %v1208
        %1414 = vmatprep.subr.mxu0 %v1211
        %1415 = vmatpush1.msra.mxu0 %v1210
        %1416 = vmatprep.subr.mxu0 %v1213
        %1417 = vmatpush1.msra.mxu0 %v1212
        %1418 = vmatprep.subr.mxu0 %v1215
        %1419 = vmatpush1.msra.mxu0 %v1214
        %1420 = vmatprep.subr.mxu0 %v1217
        %1421 = vmatpush1.msra.mxu0 %v1216
        %1422 = vmatprep.subr.mxu0 %v1219
        %1423 = vmatpush1.msra.mxu0 %v1218
        %1424 = vmatprep.subr.mxu0 %v1221
        %1425 = vmatpush1.msra.mxu0 %v1220
        %1426 = vmatprep.subr.mxu0 %v1223
        %1427 = vmatpush1.msra.mxu0 %v1222
        %1428 = vmatprep.subr.mxu0 %v1225
        %1429 = vmatpush1.msra.mxu0 %v1224
        %1430 = vmatprep.subr.mxu0 %v1227
        %1431 = vmatpush1.msra.mxu0 %v1226
        %1432 = vmatprep.subr.mxu0 %v1229
        %1433 = vmatpush1.msra.mxu0 %v1228
        %1434 = vmatprep.subr.mxu0 %v1231
        %1435 = vmatpush1.msra.mxu0 %v1230
        %1436 = vmatprep.subr.mxu0 %v1233
        %1437 = vmatpush1.msra.mxu0 %v1232
        %1438 = vmatprep.subr.mxu0 %v1235
        %1439 = vmatpush1.msra.mxu0 %v1234
        %1440 = vmatprep.subr.mxu0 %v1237
        %1441 = vmatpush1.msra.mxu0 %v1236
        %1442 = vmatprep.subr.mxu0 %v1239
        %1443 = vmatpush1.msra.mxu0 %v1238
        %1444 = vmatprep.subr.mxu0 %v1241
        %1445 = vmatpush1.msra.mxu0 %v1240
        %1446 = vmatprep.subr.mxu0 %v1243
        %1447 = vmatpush1.msra.mxu0 %v1242
        %1448 = vmatprep.subr.mxu0 %v1245
        %1449 = vmatpush1.msra.mxu0 %v1244
        %1450 = vmatprep.subr.mxu0 %v1247
        %1451 = vmatpush1.msra.mxu0 %v1246
        %1452 = vmatprep.subr.mxu0 %v1249
        %1453 = vmatpush1.msra.mxu0 %v1248
        %1454 = vmatprep.subr.mxu0 %v1251
        %1455 = vmatpush1.msra.mxu0 %v1250
        %1456 = vmatprep.subr.mxu0 %v1253
        %1457 = vmatpush1.msra.mxu0 %v1252
        %1458 = vmatprep.subr.mxu0 %v1255
        %1459 = vmatpush1.msra.mxu0 %v1254
        %1460 = vmatprep.subr.mxu0 %v1257
        %1461 = vmatpush1.msra.mxu0 %v1256
        %1462 = vmatprep.subr.mxu0 %v1259
        %1463 = vmatpush1.msra.mxu0 %v1258
        %1464 = vmatprep.subr.mxu0 %v1261
        %1465 = vmatpush1.msra.mxu0 %v1260
        %1466 = vmatprep.subr.mxu0 %v1263
        %1467 = vmatpush1.msra.mxu0 %v1262
        %1468 = vmatprep.subr.mxu0 %v1265
        %1469 = vmatpush1.msra.mxu0 %v1264
        %1470 = vmatprep.subr.mxu0 %v1267
        %1471 = vmatpush1.msra.mxu0 %v1266
        %1472 = vmatprep.mubr.f32.mxu0 %v1041
        %1473 = vmatmul.mubr.f32.gmra.mrb[0].mxu0 %v1040
        %v1474 = vpop.f32.mrb[0].mxu0
        %v1475 = vadd.f32 %v1401, %v1474
        %v1476 = vpop.f32.mrb[0].mxu0
        %v1477 = vadd.f32 %v1405, %v1476
        %1478 = vmatprep.mubr.f32.mxu0 %v1043
        %1479 = vmatmul.mubr.f32.gmra.mrb[0].mxu0 %v1042
        %v1480 = vpop.f32.mrb[0].mxu0
        %v1481 = vadd.f32 %v1401, %v1480
        %v1482 = vpop.f32.mrb[0].mxu0
        %v1483 = vadd.f32 %v1405, %v1482
        %1484 = vdwg.mxu0
        %1485 = vmatprep.subr.mxu0 %v1269
        %1486 = vmatpush1.msra.mxu0 %v1268
        %1487 = vmatprep.subr.mxu0 %v1271
        %1488 = vmatpush1.msra.mxu0 %v1270
        %1489 = vmatprep.subr.mxu0 %v1273
        %1490 = vmatpush1.msra.mxu0 %v1272
        %1491 = vmatprep.subr.mxu0 %v1275
        %1492 = vmatpush1.msra.mxu0 %v1274
        %1493 = vmatprep.subr.mxu0 %v1277
        %1494 = vmatpush1.msra.mxu0 %v1276
        %1495 = vmatprep.subr.mxu0 %v1279
        %1496 = vmatpush1.msra.mxu0 %v1278
        %1497 = vmatprep.subr.mxu0 %v1281
        %1498 = vmatpush1.msra.mxu0 %v1280
        %1499 = vmatprep.subr.mxu0 %v1283
        %1500 = vmatpush1.msra.mxu0 %v1282
        %1501 = vmatprep.subr.mxu0 %v1285
        %1502 = vmatpush1.msra.mxu0 %v1284
        %1503 = vmatprep.subr.mxu0 %v1287
        %1504 = vmatpush1.msra.mxu0 %v1286
        %1505 = vmatprep.subr.mxu0 %v1289
        %1506 = vmatpush1.msra.mxu0 %v1288
        %1507 = vmatprep.subr.mxu0 %v1291
        %1508 = vmatpush1.msra.mxu0 %v1290
        %1509 = vmatprep.subr.mxu0 %v1293
        %1510 = vmatpush1.msra.mxu0 %v1292
        %1511 = vmatprep.subr.mxu0 %v1295
        %1512 = vmatpush1.msra.mxu0 %v1294
        %1513 = vmatprep.subr.mxu0 %v1297
        %1514 = vmatpush1.msra.mxu0 %v1296
        %1515 = vmatprep.subr.mxu0 %v1299
        %1516 = vmatpush1.msra.mxu0 %v1298
        %1517 = vmatprep.subr.mxu0 %v1301
        %1518 = vmatpush1.msra.mxu0 %v1300
        %1519 = vmatprep.subr.mxu0 %v1303
        %1520 = vmatpush1.msra.mxu0 %v1302
        %1521 = vmatprep.subr.mxu0 %v1305
        %1522 = vmatpush1.msra.mxu0 %v1304
        %1523 = vmatprep.subr.mxu0 %v1307
        %1524 = vmatpush1.msra.mxu0 %v1306
        %1525 = vmatprep.subr.mxu0 %v1309
        %1526 = vmatpush1.msra.mxu0 %v1308
        %1527 = vmatprep.subr.mxu0 %v1311
        %1528 = vmatpush1.msra.mxu0 %v1310
        %1529 = vmatprep.subr.mxu0 %v1313
        %1530 = vmatpush1.msra.mxu0 %v1312
        %1531 = vmatprep.subr.mxu0 %v1315
        %1532 = vmatpush1.msra.mxu0 %v1314
        %1533 = vmatprep.subr.mxu0 %v1317
        %1534 = vmatpush1.msra.mxu0 %v1316
        %1535 = vmatprep.subr.mxu0 %v1319
        %1536 = vmatpush1.msra.mxu0 %v1318
        %1537 = vmatprep.subr.mxu0 %v1321
        %1538 = vmatpush1.msra.mxu0 %v1320
        %1539 = vmatprep.subr.mxu0 %v1323
        %1540 = vmatpush1.msra.mxu0 %v1322
        %1541 = vmatprep.subr.mxu0 %v1325
        %1542 = vmatpush1.msra.mxu0 %v1324
        %1543 = vmatprep.subr.mxu0 %v1327
        %1544 = vmatpush1.msra.mxu0 %v1326
        %1545 = vmatprep.subr.mxu0 %v1329
        %1546 = vmatpush1.msra.mxu0 %v1328
        %1547 = vmatprep.subr.mxu0 %v1331
        %1548 = vmatpush1.msra.mxu0 %v1330
        %1549 = vmatprep.mubr.f32.mxu0 %v1065
        %1550 = vmatmul.mubr.f32.gmra.mrb[0].mxu0 %v1062
        %v1551 = vpop.f32.mrb[0].mxu0
        %v1552 = vadd.f32 %v1475, %v1551
        %v1553 = vpop.f32.mrb[0].mxu0
        %v1554 = vadd.f32 %v1477, %v1553
        %1555 = vmatprep.mubr.f32.mxu0 %v1071
        %1556 = vmatmul.mubr.f32.gmra.mrb[0].mxu0 %v1068
        %v1557 = vpop.f32.mrb[0].mxu0
        %v1558 = vadd.f32 %v1481, %v1557
        %v1559 = vpop.f32.mrb[0].mxu0
        %v1560 = vadd.f32 %v1483, %v1559
        %1561 = vdwg.mxu0
        %1562 = vmatprep.subr.mxu0 %v1333
        %1563 = vmatpush1.msra.mxu0 %v1332
        %1564 = vmatprep.subr.mxu0 %v1335
        %1565 = vmatpush1.msra.mxu0 %v1334
        %1566 = vmatprep.subr.mxu0 %v1337
        %1567 = vmatpush1.msra.mxu0 %v1336
        %1568 = vmatprep.subr.mxu0 %v1339
        %1569 = vmatpush1.msra.mxu0 %v1338
        %1570 = vmatprep.subr.mxu0 %v1341
        %1571 = vmatpush1.msra.mxu0 %v1340
        %1572 = vmatprep.subr.mxu0 %v1343
        %1573 = vmatpush1.msra.mxu0 %v1342
        %1574 = vmatprep.subr.mxu0 %v1345
        %1575 = vmatpush1.msra.mxu0 %v1344
        %1576 = vmatprep.subr.mxu0 %v1347
        %1577 = vmatpush1.msra.mxu0 %v1346
        %1578 = vmatprep.subr.mxu0 %v1349
        %1579 = vmatpush1.msra.mxu0 %v1348
        %1580 = vmatprep.subr.mxu0 %v1351
        %1581 = vmatpush1.msra.mxu0 %v1350
        %1582 = vmatprep.subr.mxu0 %v1353
        %1583 = vmatpush1.msra.mxu0 %v1352
        %1584 = vmatprep.subr.mxu0 %v1355
        %1585 = vmatpush1.msra.mxu0 %v1354
        %1586 = vmatprep.subr.mxu0 %v1357
        %1587 = vmatpush1.msra.mxu0 %v1356
        %1588 = vmatprep.subr.mxu0 %v1359
        %1589 = vmatpush1.msra.mxu0 %v1358
        %1590 = vmatprep.subr.mxu0 %v1361
        %1591 = vmatpush1.msra.mxu0 %v1360
        %1592 = vmatprep.subr.mxu0 %v1363
        %1593 = vmatpush1.msra.mxu0 %v1362
        %1594 = vmatprep.subr.mxu0 %v1365
        %1595 = vmatpush1.msra.mxu0 %v1364
        %1596 = vmatprep.subr.mxu0 %v1367
        %1597 = vmatpush1.msra.mxu0 %v1366
        %1598 = vmatprep.subr.mxu0 %v1369
        %1599 = vmatpush1.msra.mxu0 %v1368
        %1600 = vmatprep.subr.mxu0 %v1371
        %1601 = vmatpush1.msra.mxu0 %v1370
        %1602 = vmatprep.subr.mxu0 %v1373
        %1603 = vmatpush1.msra.mxu0 %v1372
        %1604 = vmatprep.subr.mxu0 %v1375
        %1605 = vmatpush1.msra.mxu0 %v1374
        %1606 = vmatprep.subr.mxu0 %v1377
        %1607 = vmatpush1.msra.mxu0 %v1376
        %1608 = vmatprep.subr.mxu0 %v1379
        %1609 = vmatpush1.msra.mxu0 %v1378
        %1610 = vmatprep.subr.mxu0 %v1381
        %1611 = vmatpush1.msra.mxu0 %v1380
        %1612 = vmatprep.subr.mxu0 %v1383
        %1613 = vmatpush1.msra.mxu0 %v1382
        %1614 = vmatprep.subr.mxu0 %v1385
        %1615 = vmatpush1.msra.mxu0 %v1384
        %1616 = vmatprep.subr.mxu0 %v1387
        %1617 = vmatpush1.msra.mxu0 %v1386
        %1618 = vmatprep.subr.mxu0 %v1389
        %1619 = vmatpush1.msra.mxu0 %v1388
        %1620 = vmatprep.subr.mxu0 %v1391
        %1621 = vmatpush1.msra.mxu0 %v1390
        %1622 = vmatprep.subr.mxu0 %v1393
        %1623 = vmatpush1.msra.mxu0 %v1392
        %1624 = vmatprep.subr.mxu0 %v1395
        %1625 = vmatpush1.msra.mxu0 %v1394
        %1626 = vmatprep.mubr.f32.mxu0 %v1097
        %1627 = vmatmul.mubr.f32.gmra.mrb[0].mxu0 %v1094
        %v1628 = vpop.f32.mrb[0].mxu0
        %v1629 = vadd.f32 %v1552, %v1628
        %v1630 = vpop.f32.mrb[0].mxu0
        %v1631 = vadd.f32 %v1554, %v1630
        %1632 = vmatprep.mubr.f32.mxu0 %v1103
        %1633 = vmatmul.mubr.f32.gmra.mrb[0].mxu0 %v1100
        %v1634 = vpop.f32.mrb[0].mxu0
        %v1635 = vadd.f32 %v1558, %v1634
        %v1636 = vpop.f32.mrb[0].mxu0
        %v1637 = vadd.f32 %v1560, %v1636
        %1638 = vdwg.mxu0
        %v1639 = vadd.f32 %v383, %v1629
        %v1640 = vadd.f32 %v384, %v1631
        %v1641 = vadd.f32 %v385, %v1635
        %v1642 = vadd.f32 %v386, %v1637
        %1643 = vst [vmem:[#allocation12] sm:$0xff] %v1639
        %1644 = vst [vmem:[#allocation12 + $0x8] sm:$0xff] %v1640
        %1645 = vst [vmem:[#allocation12 + $0x10] sm:$0xff] %v1641
        %1646 = vst [vmem:[#allocation12 + $0x18] sm:$0xff] %v1642
        // Predicated region
        $region65: #{tpu_custom_call.1} parent=39 // pred_check
          %p1647 = pneg %p162
        $region66: #{tpu_custom_call.1} parent=39 // pred_check_branch
          %1649 = sbr.rel (%p1647) target = $region68
        $region67: #{tpu_custom_call.1} parent=39 // pred_region
          %s1651 = ssub.s32 512, 512
          %1652 = vsyncadd [#allocation5], %s1651
          %s1653 = sshll.u32 [#allocation12], 4
          %s1654 = int_to_ptr.vmem [resolvable:$true] %s1653
          %1659 = dma.vmem_to_hbm [thread:$0]  %s1654, 512, %s5, [#allocation5], 256, 256, 16
        $region68: #{tpu_custom_call.1} parent=39 // pred_fallthru
          _
        // Predicated region
        $region69: #{tpu_custom_call.1} parent=39 // pred_check
          %p1660 = pneg %p162
        $region70: #{tpu_custom_call.1} parent=39 // pred_check_branch
          %1662 = sbr.rel (%p1660) target = $region72
        $region71: #{tpu_custom_call.1} parent=39 // pred_region
          %1663 = dma.done [#allocation5], 512
        $region72: #{tpu_custom_call.1} parent=39 // pred_fallthru
          _
      $region40: #{tpu_custom_call.1} parent=5 // pred_fallthru
        _
      %p1664 = scmp.le.s32.totalorder 2, %s19
      // Predicated region
      $region73: #{tpu_custom_call.1} parent=5 // pred_check
        %p1665 = pneg %p1664
      $region74: #{tpu_custom_call.1} parent=5 // pred_check_branch
        %1667 = sbr.rel (%p1665) target = $region76
      $region75: #{tpu_custom_call.1} parent=5 // pred_region
        %s1668 = ssub.s32 %s19, 2
      $region76: #{tpu_custom_call.1} parent=5 // pred_fallthru
        _
    $region6: #{tpu_custom_call.1} parent=1 // loop_footer
      %s23 = sadd.s32 1, %s19
    $region7: #{tpu_custom_call.1} parent=1 // loop_footer_branch
      %18 = sbr.rel target = $region3
    $region8: #{tpu_custom_call.1} parent=1 // loop_exit
      _
    %1669 = vsyncpa [#allocation4], 1
    %s1670 = scalar_lea.sflag [#allocation4], 1
    %1671 = vsyncpa %s1670, 1
    %1672 = vsyncpa [#allocation7], 1
    %s1673 = scalar_lea.sflag [#allocation7], 1
    %1674 = vsyncpa %s1673, 1
    %1675 = vsyncpa [#allocation10], 1
    %s1676 = scalar_lea.sflag [#allocation10], 1
    %1677 = vsyncpa %s1676, 1
    %1678 = vsyncpa [#allocation5], 1
    %s1679 = scalar_lea.sflag [#allocation5], 1
    %1680 = vsyncpa %s1679, 1

</llo_original>
